<compile_context>
chip_gen: v7x
topology: tpu7x:2x2x1
jax: 0.10.0
libtpu: 0.0.40
codegen_flags: <defaults>
</compile_context>

<pallas_src>
import functools

import jax
import jax.numpy as jnp
from jax import lax
from jax.experimental import pallas as pl
from jax.experimental.pallas import tpu as pltpu


# ----------------------------- Pallas kernel --------------------------------

def _linear_attention_kernel(x_ref, w_qkv_ref, w_out_ref, b_out_ref,
                             gamma_ref, beta_ref, o_ref,
                             *, heads, dim_head, scale, eps):
    """One grid step == one batch element, fully resident in VMEM.

    x_ref:     (1, C_pad, N)   channels (zero-padded to multiple of 8) x pixels
    w_qkv_ref: (3*hidden, C_pad)
    w_out_ref: (C, hidden)
    b_out/gamma/beta: (C, 1)
    o_ref:     (1, C, N)
    """
    x = x_ref[0]                                           # (C_pad, N)
    hidden = heads * dim_head

    # ---- to_qkv: 1x1 conv (no bias) == matmul over the channel dim ---------
    qkv = jnp.dot(w_qkv_ref[...], x,
                  preferred_element_type=jnp.float32)      # (3*hidden, N)

    head_outs = []
    for h in range(heads):                                 # static unroll (4)
        lo = h * dim_head
        qh = qkv[lo:lo + dim_head, :]                            # (d, N)
        kh = qkv[hidden + lo:hidden + lo + dim_head, :]          # (d, N)
        vh = qkv[2 * hidden + lo:2 * hidden + lo + dim_head, :]  # (e, N)

        # softmax over d (sublane axis), then * scale
        qh = qh - jnp.max(qh, axis=0, keepdims=True)
        qh = jnp.exp(qh)
        qh = qh / jnp.sum(qh, axis=0, keepdims=True)
        qh = qh * scale

        # softmax over n (lane axis)
        kh = kh - jnp.max(kh, axis=1, keepdims=True)
        kh = jnp.exp(kh)
        kh = kh / jnp.sum(kh, axis=1, keepdims=True)

        # context[d, e] = sum_n k[d, n] * v[e, n]
        context = lax.dot_general(
            kh, vh, (((1,), (1,)), ((), ())),
            preferred_element_type=jnp.float32)                  # (d, e)

        # out[e, n] = sum_d context[d, e] * q[d, n]
        out_h = lax.dot_general(
            context, qh, (((0,), (0,)), ((), ())),
            preferred_element_type=jnp.float32)                  # (e, N)
        head_outs.append(out_h)

    out_all = jnp.concatenate(head_outs, axis=0)                 # (hidden, N)

    # ---- to_out[0]: 1x1 conv with bias --------------------------------------
    y = jnp.dot(w_out_ref[...], out_all,
                preferred_element_type=jnp.float32)              # (C, N)
    y = y + b_out_ref[...]                                       # (C,1) bcast

    # ---- to_out[1]: GroupNorm(1, C): normalize over all C*N elems ----------
    def _full_mean(z):                                           # (C,N) -> (1,1)
        return jnp.mean(jnp.mean(z, axis=1, keepdims=True), axis=0, keepdims=True)

    mu = _full_mean(y)
    var = _full_mean(jnp.square(y - mu))
    y = (y - mu) * lax.rsqrt(var + eps)
    y = y * gamma_ref[...] + beta_ref[...]

    o_ref[0] = y.astype(o_ref.dtype)


# ------------------------------- wrapper -------------------------------------

def linear_attention(x, w_qkv, w_out, b_out, gamma, beta,
                     *, heads=4, dim_head=32, eps=1e-5):
    """Fused LinearAttention forward. x: (B, C, H, W) NCHW float32."""
    B, C, H, W = x.shape
    N = H * W
    hidden = heads * dim_head
    assert w_qkv.shape == (3 * hidden, C)
    assert w_out.shape == (C, hidden)
    scale = float(dim_head) ** -0.5

    # Lane-dense layout: spatial n = H*W on the 128-wide lane axis (contiguous
    # reshape, no data movement).  Non-multiple-of-128 N still works via the
    # full-dim block exception (masked lanes), just slightly less efficient.
    x2 = x.reshape(B, C, N)
    b2 = b_out.reshape(C, 1)
    g2 = gamma.reshape(C, 1)
    be2 = beta.reshape(C, 1)

    # Zero-pad the channel (contraction) dim to a multiple of 8 so the qkv
    # matmul uses full-width sublane tiles; zeros contribute nothing.
    C_pad = ((C + 7) // 8) * 8
    if C_pad != C:
        x2 = jnp.pad(x2, ((0, 0), (0, C_pad - C), (0, 0)))
        w_qkv_p = jnp.pad(w_qkv, ((0, 0), (0, C_pad - C)))
    else:
        w_qkv_p = w_qkv

    kernel = functools.partial(
        _linear_attention_kernel,
        heads=heads, dim_head=dim_head, scale=scale, eps=eps)

    # TODO(synk): for very large H*W a two-pass (or online) k-softmax with an
    # N-tiled grid axis would be needed; a full sample fits VMEM at these sizes.
    out = pl.pallas_call(
        kernel,
        out_shape=jax.ShapeDtypeStruct((B, C, N), x.dtype),
        grid=(B,),
        in_specs=[
            pl.BlockSpec((1, C_pad, N), lambda b: (b, 0, 0)),     # x (per batch)
            pl.BlockSpec((3 * hidden, C_pad), lambda b: (0, 0)),  # w_qkv
            pl.BlockSpec((C, hidden), lambda b: (0, 0)),          # w_out
            pl.BlockSpec((C, 1), lambda b: (0, 0)),               # b_out
            pl.BlockSpec((C, 1), lambda b: (0, 0)),               # gamma
            pl.BlockSpec((C, 1), lambda b: (0, 0)),               # beta
        ],
        out_specs=pl.BlockSpec((1, C, N), lambda b: (b, 0, 0)),
        compiler_params=pltpu.CompilerParams(
            dimension_semantics=("parallel",)),   # shard batch across TCs (v7x)
    )(x2, w_qkv_p, w_out, b2, g2, be2)

    return out.reshape(B, C, H, W)


# ---------------------------- pure-JAX reference -----------------------------

def linear_attention_ref(x, w_qkv, w_out, b_out, gamma, beta,
                         *, heads=4, dim_head=32, eps=1e-5):
    B, C, H, W = x.shape
    N = H * W
    hidden = heads * dim_head
    scale = float(dim_head) ** -0.5
    hp = jax.lax.Precision.HIGHEST

    xf = x.reshape(B, C, N)
    qkv = jnp.einsum('oc,bcn->bon', w_qkv, xf, precision=hp)
    q, k, v = jnp.split(qkv, 3, axis=1)
    q = q.reshape(B, heads, dim_head, N)
    k = k.reshape(B, heads, dim_head, N)
    v = v.reshape(B, heads, dim_head, N)
    q = jax.nn.softmax(q, axis=-2) * scale
    k = jax.nn.softmax(k, axis=-1)
    context = jnp.einsum('bhdn,bhen->bhde', k, v, precision=hp)
    out = jnp.einsum('bhde,bhdn->bhen', context, q, precision=hp)
    out = out.reshape(B, hidden, N)
    y = jnp.einsum('ch,bhn->bcn', w_out, out, precision=hp) + b_out[None, :, None]
    mu = jnp.mean(y, axis=(1, 2), keepdims=True)
    var = jnp.mean(jnp.square(y - mu), axis=(1, 2), keepdims=True)
    y = (y - mu) / jnp.sqrt(var + eps)
    y = y * gamma[None, :, None] + beta[None, :, None]
    return y.reshape(B, C, H, W)


# ---------------------------------- main -------------------------------------

if __name__ == "__main__":
    key = jax.random.PRNGKey(0)
    k_x, k_qkv, k_out, k_b, k_g, k_be = jax.random.split(key, 6)

    B, C, H, W = 2, 4, 16, 16          # NCHW, matches the PyTorch module
    heads, dim_head = 4, 32
    hidden = heads * dim_head          # 128

    x = jax.random.normal(k_x, (B, C, H, W), dtype=jnp.float32)
    w_qkv = jax.random.normal(k_qkv, (3 * hidden, C), dtype=jnp.float32) * 0.2
    w_out = jax.random.normal(k_out, (C, hidden), dtype=jnp.float32) * 0.1
    b_out = jax.random.normal(k_b, (C,), dtype=jnp.float32) * 0.1
    gamma = 1.0 + 0.1 * jax.random.normal(k_g, (C,), dtype=jnp.float32)
    beta = 0.1 * jax.random.normal(k_be, (C,), dtype=jnp.float32)

    out = linear_attention(x, w_qkv, w_out, b_out, gamma, beta,
                           heads=heads, dim_head=dim_head)
    out = jax.block_until_ready(out)

    ref = linear_attention_ref(x, w_qkv, w_out, b_out, gamma, beta,
                               heads=heads, dim_head=dim_head)
    assert out.shape == x.shape and out.dtype == x.dtype
    # tolerance allows for MXU matmul rounding vs the HIGHEST-precision XLA ref
    assert jnp.allclose(out, ref, atol=1e-2, rtol=1e-2), (
        "mismatch vs reference: max abs diff = "
        f"{float(jnp.max(jnp.abs(out - ref)))}")

    print("KERNEL_OK")
</pallas_src>

<mosaic_0001>
module attributes {stable_mosaic.version = 11 : i64} {
  func.func @_linear_attention_kernel(%arg0: i32, %arg1: memref<1x8x256xf32, #tpu.memory_space<vmem>>, %arg2: memref<384x8xf32, #tpu.memory_space<vmem>>, %arg3: memref<4x128xf32, #tpu.memory_space<vmem>>, %arg4: memref<4x1xf32, #tpu.memory_space<vmem>>, %arg5: memref<4x1xf32, #tpu.memory_space<vmem>>, %arg6: memref<4x1xf32, #tpu.memory_space<vmem>>, %arg7: memref<1x4x256xf32, #tpu.memory_space<vmem>>) attributes {dimension_semantics = [#tpu.dimension_semantics<parallel>], iteration_bounds = array<i64: 2>, scalar_prefetch = 0 : i64, scratch_operands = 0 : i64, tpu.core_type = #tpu.core_type<tc>, window_params = [{transform_indices = @transform_0, window_bounds = array<i64: 1, 8, 256>}, {pipeline_mode = #tpu.pipeline_mode<synchronous>, transform_indices = @transform_1, window_bounds = array<i64: 384, 8>}, {pipeline_mode = #tpu.pipeline_mode<synchronous>, transform_indices = @transform_2, window_bounds = array<i64: 4, 128>}, {pipeline_mode = #tpu.pipeline_mode<synchronous>, transform_indices = @transform_3, window_bounds = array<i64: 4, 1>}, {pipeline_mode = #tpu.pipeline_mode<synchronous>, transform_indices = @transform_4, window_bounds = array<i64: 4, 1>}, {pipeline_mode = #tpu.pipeline_mode<synchronous>, transform_indices = @transform_5, window_bounds = array<i64: 4, 1>}, {transform_indices = @transform_6, window_bounds = array<i64: 1, 4, 256>}]} {
    %c0 = arith.constant 0 : index
    %c0_0 = arith.constant 0 : index
    %c0_1 = arith.constant 0 : index
    %0 = vector.load %arg1[%c0, %c0_0, %c0_1] : memref<1x8x256xf32, #tpu.memory_space<vmem>>, vector<1x8x256xf32>
    %1 = vector.shape_cast %0 : vector<1x8x256xf32> to vector<8x256xf32>
    %c0_2 = arith.constant 0 : index
    %c0_3 = arith.constant 0 : index
    %2 = vector.load %arg2[%c0_2, %c0_3] : memref<384x8xf32, #tpu.memory_space<vmem>>, vector<384x8xf32>
    %cst = arith.constant dense<0.000000e+00> : vector<384x256xf32>
    %3 = tpu.matmul %2, %1, %cst {dimension_numbers = #tpu.dot_dimension_numbers<[1], [0], [0], [1], [0, 0, 1, 1], [], []>} : vector<384x8xf32>, vector<8x256xf32>, vector<384x256xf32> -> vector<384x256xf32>
    %4 = vector.extract_strided_slice %3 {offsets = [0, 0], sizes = [32, 256], strides = [1, 1]} : vector<384x256xf32> to vector<32x256xf32>
    %5 = vector.extract_strided_slice %3 {offsets = [128, 0], sizes = [32, 256], strides = [1, 1]} : vector<384x256xf32> to vector<32x256xf32>
    %6 = vector.extract_strided_slice %3 {offsets = [256, 0], sizes = [32, 256], strides = [1, 1]} : vector<384x256xf32> to vector<32x256xf32>
    %cst_4 = arith.constant dense<0xFF800000> : vector<256xf32>
    %7 = vector.multi_reduction <maximumf>, %4, %cst_4 [0] : vector<32x256xf32> to vector<256xf32>
    %8 = vector.shape_cast %7 : vector<256xf32> to vector<1x256xf32>
    %9 = vector.broadcast %8 : vector<1x256xf32> to vector<32x256xf32>
    %10 = arith.subf %4, %9 : vector<32x256xf32>
    %11 = math.exp %10 : vector<32x256xf32>
    %cst_5 = arith.constant dense<0.000000e+00> : vector<256xf32>
    %12 = vector.multi_reduction <add>, %11, %cst_5 [0] : vector<32x256xf32> to vector<256xf32>
    %13 = vector.shape_cast %12 : vector<256xf32> to vector<1x256xf32>
    %14 = vector.broadcast %13 : vector<1x256xf32> to vector<32x256xf32>
    %15 = arith.divf %11, %14 : vector<32x256xf32>
    %cst_6 = arith.constant 0.176776692 : f32
    %16 = vector.broadcast %cst_6 : f32 to vector<32x256xf32>
    %17 = arith.mulf %15, %16 : vector<32x256xf32>
    %cst_7 = arith.constant dense<0xFF800000> : vector<32xf32>
    %18 = vector.multi_reduction <maximumf>, %5, %cst_7 [1] : vector<32x256xf32> to vector<32xf32>
    %19 = vector.shape_cast %18 : vector<32xf32> to vector<32x1xf32>
    %20 = vector.broadcast %19 : vector<32x1xf32> to vector<32x256xf32>
    %21 = arith.subf %5, %20 : vector<32x256xf32>
    %22 = math.exp %21 : vector<32x256xf32>
    %cst_8 = arith.constant dense<0.000000e+00> : vector<32xf32>
    %23 = vector.multi_reduction <add>, %22, %cst_8 [1] : vector<32x256xf32> to vector<32xf32>
    %24 = vector.shape_cast %23 : vector<32xf32> to vector<32x1xf32>
    %25 = vector.broadcast %24 : vector<32x1xf32> to vector<32x256xf32>
    %26 = arith.divf %22, %25 : vector<32x256xf32>
    %cst_9 = arith.constant dense<0.000000e+00> : vector<32x32xf32>
    %27 = tpu.matmul %26, %6, %cst_9 {dimension_numbers = #tpu.dot_dimension_numbers<[1], [1], [0], [0], [0, 0, 1, 0], [], []>} : vector<32x256xf32>, vector<32x256xf32>, vector<32x32xf32> -> vector<32x32xf32>
    %cst_10 = arith.constant dense<0.000000e+00> : vector<32x256xf32>
    %28 = tpu.matmul %27, %17, %cst_10 {dimension_numbers = #tpu.dot_dimension_numbers<[0], [0], [1], [1], [0, 1, 1, 1], [], []>} : vector<32x32xf32>, vector<32x256xf32>, vector<32x256xf32> -> vector<32x256xf32>
    %29 = vector.extract_strided_slice %3 {offsets = [32, 0], sizes = [32, 256], strides = [1, 1]} : vector<384x256xf32> to vector<32x256xf32>
    %30 = vector.extract_strided_slice %3 {offsets = [160, 0], sizes = [32, 256], strides = [1, 1]} : vector<384x256xf32> to vector<32x256xf32>
    %31 = vector.extract_strided_slice %3 {offsets = [288, 0], sizes = [32, 256], strides = [1, 1]} : vector<384x256xf32> to vector<32x256xf32>
    %cst_11 = arith.constant dense<0xFF800000> : vector<256xf32>
    %32 = vector.multi_reduction <maximumf>, %29, %cst_11 [0] : vector<32x256xf32> to vector<256xf32>
    %33 = vector.shape_cast %32 : vector<256xf32> to vector<1x256xf32>
    %34 = vector.broadcast %33 : vector<1x256xf32> to vector<32x256xf32>
    %35 = arith.subf %29, %34 : vector<32x256xf32>
    %36 = math.exp %35 : vector<32x256xf32>
    %cst_12 = arith.constant dense<0.000000e+00> : vector<256xf32>
    %37 = vector.multi_reduction <add>, %36, %cst_12 [0] : vector<32x256xf32> to vector<256xf32>
    %38 = vector.shape_cast %37 : vector<256xf32> to vector<1x256xf32>
    %39 = vector.broadcast %38 : vector<1x256xf32> to vector<32x256xf32>
    %40 = arith.divf %36, %39 : vector<32x256xf32>
    %cst_13 = arith.constant 0.176776692 : f32
    %41 = vector.broadcast %cst_13 : f32 to vector<32x256xf32>
    %42 = arith.mulf %40, %41 : vector<32x256xf32>
    %cst_14 = arith.constant dense<0xFF800000> : vector<32xf32>
    %43 = vector.multi_reduction <maximumf>, %30, %cst_14 [1] : vector<32x256xf32> to vector<32xf32>
    %44 = vector.shape_cast %43 : vector<32xf32> to vector<32x1xf32>
    %45 = vector.broadcast %44 : vector<32x1xf32> to vector<32x256xf32>
    %46 = arith.subf %30, %45 : vector<32x256xf32>
    %47 = math.exp %46 : vector<32x256xf32>
    %cst_15 = arith.constant dense<0.000000e+00> : vector<32xf32>
    %48 = vector.multi_reduction <add>, %47, %cst_15 [1] : vector<32x256xf32> to vector<32xf32>
    %49 = vector.shape_cast %48 : vector<32xf32> to vector<32x1xf32>
    %50 = vector.broadcast %49 : vector<32x1xf32> to vector<32x256xf32>
    %51 = arith.divf %47, %50 : vector<32x256xf32>
    %cst_16 = arith.constant dense<0.000000e+00> : vector<32x32xf32>
    %52 = tpu.matmul %51, %31, %cst_16 {dimension_numbers = #tpu.dot_dimension_numbers<[1], [1], [0], [0], [0, 0, 1, 0], [], []>} : vector<32x256xf32>, vector<32x256xf32>, vector<32x32xf32> -> vector<32x32xf32>
    %cst_17 = arith.constant dense<0.000000e+00> : vector<32x256xf32>
    %53 = tpu.matmul %52, %42, %cst_17 {dimension_numbers = #tpu.dot_dimension_numbers<[0], [0], [1], [1], [0, 1, 1, 1], [], []>} : vector<32x32xf32>, vector<32x256xf32>, vector<32x256xf32> -> vector<32x256xf32>
    %54 = vector.extract_strided_slice %3 {offsets = [64, 0], sizes = [32, 256], strides = [1, 1]} : vector<384x256xf32> to vector<32x256xf32>
    %55 = vector.extract_strided_slice %3 {offsets = [192, 0], sizes = [32, 256], strides = [1, 1]} : vector<384x256xf32> to vector<32x256xf32>
    %56 = vector.extract_strided_slice %3 {offsets = [320, 0], sizes = [32, 256], strides = [1, 1]} : vector<384x256xf32> to vector<32x256xf32>
    %cst_18 = arith.constant dense<0xFF800000> : vector<256xf32>
    %57 = vector.multi_reduction <maximumf>, %54, %cst_18 [0] : vector<32x256xf32> to vector<256xf32>
    %58 = vector.shape_cast %57 : vector<256xf32> to vector<1x256xf32>
    %59 = vector.broadcast %58 : vector<1x256xf32> to vector<32x256xf32>
    %60 = arith.subf %54, %59 : vector<32x256xf32>
    %61 = math.exp %60 : vector<32x256xf32>
    %cst_19 = arith.constant dense<0.000000e+00> : vector<256xf32>
    %62 = vector.multi_reduction <add>, %61, %cst_19 [0] : vector<32x256xf32> to vector<256xf32>
    %63 = vector.shape_cast %62 : vector<256xf32> to vector<1x256xf32>
    %64 = vector.broadcast %63 : vector<1x256xf32> to vector<32x256xf32>
    %65 = arith.divf %61, %64 : vector<32x256xf32>
    %cst_20 = arith.constant 0.176776692 : f32
    %66 = vector.broadcast %cst_20 : f32 to vector<32x256xf32>
    %67 = arith.mulf %65, %66 : vector<32x256xf32>
    %cst_21 = arith.constant dense<0xFF800000> : vector<32xf32>
    %68 = vector.multi_reduction <maximumf>, %55, %cst_21 [1] : vector<32x256xf32> to vector<32xf32>
    %69 = vector.shape_cast %68 : vector<32xf32> to vector<32x1xf32>
    %70 = vector.broadcast %69 : vector<32x1xf32> to vector<32x256xf32>
    %71 = arith.subf %55, %70 : vector<32x256xf32>
    %72 = math.exp %71 : vector<32x256xf32>
    %cst_22 = arith.constant dense<0.000000e+00> : vector<32xf32>
    %73 = vector.multi_reduction <add>, %72, %cst_22 [1] : vector<32x256xf32> to vector<32xf32>
    %74 = vector.shape_cast %73 : vector<32xf32> to vector<32x1xf32>
    %75 = vector.broadcast %74 : vector<32x1xf32> to vector<32x256xf32>
    %76 = arith.divf %72, %75 : vector<32x256xf32>
    %cst_23 = arith.constant dense<0.000000e+00> : vector<32x32xf32>
    %77 = tpu.matmul %76, %56, %cst_23 {dimension_numbers = #tpu.dot_dimension_numbers<[1], [1], [0], [0], [0, 0, 1, 0], [], []>} : vector<32x256xf32>, vector<32x256xf32>, vector<32x32xf32> -> vector<32x32xf32>
    %cst_24 = arith.constant dense<0.000000e+00> : vector<32x256xf32>
    %78 = tpu.matmul %77, %67, %cst_24 {dimension_numbers = #tpu.dot_dimension_numbers<[0], [0], [1], [1], [0, 1, 1, 1], [], []>} : vector<32x32xf32>, vector<32x256xf32>, vector<32x256xf32> -> vector<32x256xf32>
    %79 = vector.extract_strided_slice %3 {offsets = [96, 0], sizes = [32, 256], strides = [1, 1]} : vector<384x256xf32> to vector<32x256xf32>
    %80 = vector.extract_strided_slice %3 {offsets = [224, 0], sizes = [32, 256], strides = [1, 1]} : vector<384x256xf32> to vector<32x256xf32>
    %81 = vector.extract_strided_slice %3 {offsets = [352, 0], sizes = [32, 256], strides = [1, 1]} : vector<384x256xf32> to vector<32x256xf32>
    %cst_25 = arith.constant dense<0xFF800000> : vector<256xf32>
    %82 = vector.multi_reduction <maximumf>, %79, %cst_25 [0] : vector<32x256xf32> to vector<256xf32>
    %83 = vector.shape_cast %82 : vector<256xf32> to vector<1x256xf32>
    %84 = vector.broadcast %83 : vector<1x256xf32> to vector<32x256xf32>
    %85 = arith.subf %79, %84 : vector<32x256xf32>
    %86 = math.exp %85 : vector<32x256xf32>
    %cst_26 = arith.constant dense<0.000000e+00> : vector<256xf32>
    %87 = vector.multi_reduction <add>, %86, %cst_26 [0] : vector<32x256xf32> to vector<256xf32>
    %88 = vector.shape_cast %87 : vector<256xf32> to vector<1x256xf32>
    %89 = vector.broadcast %88 : vector<1x256xf32> to vector<32x256xf32>
    %90 = arith.divf %86, %89 : vector<32x256xf32>
    %cst_27 = arith.constant 0.176776692 : f32
    %91 = vector.broadcast %cst_27 : f32 to vector<32x256xf32>
    %92 = arith.mulf %90, %91 : vector<32x256xf32>
    %cst_28 = arith.constant dense<0xFF800000> : vector<32xf32>
    %93 = vector.multi_reduction <maximumf>, %80, %cst_28 [1] : vector<32x256xf32> to vector<32xf32>
    %94 = vector.shape_cast %93 : vector<32xf32> to vector<32x1xf32>
    %95 = vector.broadcast %94 : vector<32x1xf32> to vector<32x256xf32>
    %96 = arith.subf %80, %95 : vector<32x256xf32>
    %97 = math.exp %96 : vector<32x256xf32>
    %cst_29 = arith.constant dense<0.000000e+00> : vector<32xf32>
    %98 = vector.multi_reduction <add>, %97, %cst_29 [1] : vector<32x256xf32> to vector<32xf32>
    %99 = vector.shape_cast %98 : vector<32xf32> to vector<32x1xf32>
    %100 = vector.broadcast %99 : vector<32x1xf32> to vector<32x256xf32>
    %101 = arith.divf %97, %100 : vector<32x256xf32>
    %cst_30 = arith.constant dense<0.000000e+00> : vector<32x32xf32>
    %102 = tpu.matmul %101, %81, %cst_30 {dimension_numbers = #tpu.dot_dimension_numbers<[1], [1], [0], [0], [0, 0, 1, 0], [], []>} : vector<32x256xf32>, vector<32x256xf32>, vector<32x32xf32> -> vector<32x32xf32>
    %cst_31 = arith.constant dense<0.000000e+00> : vector<32x256xf32>
    %103 = tpu.matmul %102, %92, %cst_31 {dimension_numbers = #tpu.dot_dimension_numbers<[0], [0], [1], [1], [0, 1, 1, 1], [], []>} : vector<32x32xf32>, vector<32x256xf32>, vector<32x256xf32> -> vector<32x256xf32>
    %104 = tpu.concatenate %28, %53, %78, %103 in 0 : vector<32x256xf32>, vector<32x256xf32>, vector<32x256xf32>, vector<32x256xf32> -> vector<128x256xf32>
    %c0_32 = arith.constant 0 : index
    %c0_33 = arith.constant 0 : index
    %105 = vector.load %arg3[%c0_32, %c0_33] : memref<4x128xf32, #tpu.memory_space<vmem>>, vector<4x128xf32>
    %cst_34 = arith.constant dense<0.000000e+00> : vector<4x256xf32>
    %106 = tpu.matmul %105, %104, %cst_34 {dimension_numbers = #tpu.dot_dimension_numbers<[1], [0], [0], [1], [0, 0, 1, 1], [], []>} : vector<4x128xf32>, vector<128x256xf32>, vector<4x256xf32> -> vector<4x256xf32>
    %c0_35 = arith.constant 0 : index
    %c0_36 = arith.constant 0 : index
    %107 = vector.load %arg4[%c0_35, %c0_36] : memref<4x1xf32, #tpu.memory_space<vmem>>, vector<4x1xf32>
    %108 = vector.broadcast %107 : vector<4x1xf32> to vector<4x256xf32>
    %109 = arith.addf %106, %108 : vector<4x256xf32>
    %cst_37 = arith.constant dense<0.000000e+00> : vector<4xf32>
    %110 = vector.multi_reduction <add>, %109, %cst_37 [1] : vector<4x256xf32> to vector<4xf32>
    %111 = vector.shape_cast %110 : vector<4xf32> to vector<4x1xf32>
    %cst_38 = arith.constant 2.560000e+02 : f32
    %112 = vector.broadcast %cst_38 : f32 to vector<4x1xf32>
    %113 = arith.divf %111, %112 : vector<4x1xf32>
    %cst_39 = arith.constant dense<0.000000e+00> : vector<1xf32>
    %114 = vector.multi_reduction <add>, %113, %cst_39 [0] : vector<4x1xf32> to vector<1xf32>
    %115 = vector.shape_cast %114 : vector<1xf32> to vector<1x1xf32>
    %cst_40 = arith.constant 4.000000e+00 : f32
    %116 = vector.broadcast %cst_40 : f32 to vector<1x1xf32>
    %117 = arith.divf %115, %116 : vector<1x1xf32>
    %118 = vector.broadcast %117 : vector<1x1xf32> to vector<4x256xf32>
    %119 = arith.subf %109, %118 : vector<4x256xf32>
    %120 = arith.mulf %119, %119 : vector<4x256xf32>
    %cst_41 = arith.constant dense<0.000000e+00> : vector<4xf32>
    %121 = vector.multi_reduction <add>, %120, %cst_41 [1] : vector<4x256xf32> to vector<4xf32>
    %122 = vector.shape_cast %121 : vector<4xf32> to vector<4x1xf32>
    %cst_42 = arith.constant 2.560000e+02 : f32
    %123 = vector.broadcast %cst_42 : f32 to vector<4x1xf32>
    %124 = arith.divf %122, %123 : vector<4x1xf32>
    %cst_43 = arith.constant dense<0.000000e+00> : vector<1xf32>
    %125 = vector.multi_reduction <add>, %124, %cst_43 [0] : vector<4x1xf32> to vector<1xf32>
    %126 = vector.shape_cast %125 : vector<1xf32> to vector<1x1xf32>
    %cst_44 = arith.constant 4.000000e+00 : f32
    %127 = vector.broadcast %cst_44 : f32 to vector<1x1xf32>
    %128 = arith.divf %126, %127 : vector<1x1xf32>
    %129 = vector.broadcast %117 : vector<1x1xf32> to vector<4x256xf32>
    %130 = arith.subf %109, %129 : vector<4x256xf32>
    %cst_45 = arith.constant 9.99999974E-6 : f32
    %131 = vector.broadcast %cst_45 : f32 to vector<1x1xf32>
    %132 = arith.addf %128, %131 : vector<1x1xf32>
    %133 = math.rsqrt %132 : vector<1x1xf32>
    %134 = vector.broadcast %133 : vector<1x1xf32> to vector<4x256xf32>
    %135 = arith.mulf %130, %134 : vector<4x256xf32>
    %c0_46 = arith.constant 0 : index
    %c0_47 = arith.constant 0 : index
    %136 = vector.load %arg5[%c0_46, %c0_47] : memref<4x1xf32, #tpu.memory_space<vmem>>, vector<4x1xf32>
    %137 = vector.broadcast %136 : vector<4x1xf32> to vector<4x256xf32>
    %138 = arith.mulf %135, %137 : vector<4x256xf32>
    %c0_48 = arith.constant 0 : index
    %c0_49 = arith.constant 0 : index
    %139 = vector.load %arg6[%c0_48, %c0_49] : memref<4x1xf32, #tpu.memory_space<vmem>>, vector<4x1xf32>
    %140 = vector.broadcast %139 : vector<4x1xf32> to vector<4x256xf32>
    %141 = arith.addf %138, %140 : vector<4x256xf32>
    %c0_50 = arith.constant 0 : index
    %c0_51 = arith.constant 0 : index
    %c0_52 = arith.constant 0 : index
    %142 = vector.load %arg7[%c0_50, %c0_51, %c0_52] : memref<1x4x256xf32, #tpu.memory_space<vmem>>, vector<1x4x256xf32>
    %143 = vector.shape_cast %142 : vector<1x4x256xf32> to vector<4x256xf32>
    %144 = vector.shape_cast %141 : vector<4x256xf32> to vector<1x4x256xf32>
    tpu.vector_store %arg7[%c0_50, %c0_51, %c0_52], %144 {strides = array<i32>} : memref<1x4x256xf32, #tpu.memory_space<vmem>>, vector<1x4x256xf32>,
    return
  }
  func.func @transform_0(%arg0: i32) -> (i32, i32, i32) {
    %c0_i32 = arith.constant 0 : i32
    %c0_i32_0 = arith.constant 0 : i32
    %c0_i32_1 = arith.constant 0 : i32
    return %arg0, %c0_i32, %c0_i32_0 : i32, i32, i32
  }
  func.func @transform_1(%arg0: i32) -> (i32, i32) {
    %c0_i32 = arith.constant 0 : i32
    %c0_i32_0 = arith.constant 0 : i32
    %c0_i32_1 = arith.constant 0 : i32
    return %c0_i32, %c0_i32_0 : i32, i32
  }
  func.func @transform_2(%arg0: i32) -> (i32, i32) {
    %c0_i32 = arith.constant 0 : i32
    %c0_i32_0 = arith.constant 0 : i32
    %c0_i32_1 = arith.constant 0 : i32
    return %c0_i32, %c0_i32_0 : i32, i32
  }
  func.func @transform_3(%arg0: i32) -> (i32, i32) {
    %c0_i32 = arith.constant 0 : i32
    %c0_i32_0 = arith.constant 0 : i32
    %c0_i32_1 = arith.constant 0 : i32
    return %c0_i32, %c0_i32_0 : i32, i32
  }
  func.func @transform_4(%arg0: i32) -> (i32, i32) {
    %c0_i32 = arith.constant 0 : i32
    %c0_i32_0 = arith.constant 0 : i32
    %c0_i32_1 = arith.constant 0 : i32
    return %c0_i32, %c0_i32_0 : i32, i32
  }
  func.func @transform_5(%arg0: i32) -> (i32, i32) {
    %c0_i32 = arith.constant 0 : i32
    %c0_i32_0 = arith.constant 0 : i32
    %c0_i32_1 = arith.constant 0 : i32
    return %c0_i32, %c0_i32_0 : i32, i32
  }
  func.func @transform_6(%arg0: i32) -> (i32, i32, i32) {
    %c0_i32 = arith.constant 0 : i32
    %c0_i32_0 = arith.constant 0 : i32
    %c0_i32_1 = arith.constant 0 : i32
    return %arg0, %c0_i32, %c0_i32_0 : i32, i32, i32
  }
}

</mosaic_0001>

<llo_original>
// kernel: tpu_custom_call.1
$region0: #{tpu_custom_call.1}
  #allocation0 [shape = 'u32[]', space=smem, size = 0x4, offset = 0x4, fixed_abs, tag = 'smem constant byte address 0x4 - core index']
  #allocation1 [shape = 'u32[144,128]{1,0:T(1,128)}', space=vmem, size = 0x12000, scoped, tag = 'internal scratch']
  %s0 = inlined_call_operand.vmem [shape: f32[2,8,256], index: 0, kind: input, shape index: {}]
  %s1 = inlined_call_operand.vmem [shape: f32[384,8], index: 1, kind: input, shape index: {}]
  %s2 = inlined_call_operand.vmem [shape: f32[4,128], index: 2, kind: input, shape index: {}]
  %s3 = inlined_call_operand.vmem [shape: f32[4,1], index: 3, kind: input, shape index: {}]
  %s4 = inlined_call_operand.vmem [shape: f32[4,1], index: 4, kind: input, shape index: {}]
  %s5 = inlined_call_operand.vmem [shape: f32[4,1], index: 5, kind: input, shape index: {}]
  %s6 = inlined_call_operand.hbm [shape: f32[2,4,256], index: 6, kind: output, shape index: {}]
  %s7 = sld [smem:[#allocation0]]
  $region57: #{tpu_custom_call.1} parent=0
    _
  %s9 = ssub.s32 1, %s7
  %s10 = scalar_select 0, %s9, %s7
  $region1: #{tpu_custom_call.1} parent=0
    #allocation2 [shape = 'u8[8192]{0}', space=vmem, size = 0x2000, scoped, tag = 'output window, operand 0']
    #allocation3 [shape = 's32[2]{0}', space=sflag, size = 0x8, scoped, tag = 'scoped memory for tpu_custom_call.1']
    %11 = vsyncpa [#allocation3], 0
    %s12 = scalar_lea.sflag [#allocation3], 1
    %13 = vsyncpa %s12, 0
    loop: start=0, step=1, limit=4
    $region2: #{tpu_custom_call.1} parent=1 // loop_pre_header
      _
    $region3: #{tpu_custom_call.1} parent=1 // loop_header
      %s15 = sphi 0, %s19
      %p16 = scmp.ge.s32.totalorder %s15, 4
      %s25 = sphi 0, %s27
      %s28 = sphi 0, %s25
      %s29 = sphi 0, %s28
      %s45 = sphi 0, %s29
      %s49 = sphi 0, %s49
      %s51 = sphi 0, %s49
      %s52 = sphi 0, %s51
      %s66 = sphi 0, %s52
      %s70 = sphi 0, %s70
      %s72 = sphi 0, %s70
      %s73 = sphi 0, %s72
      %s87 = sphi 0, %s73
      %s91 = sphi 0, %s91
      %s93 = sphi 0, %s91
      %s94 = sphi 0, %s93
      %s108 = sphi 0, %s94
      %s112 = sphi 0, %s112
      %s114 = sphi 0, %s112
      %s115 = sphi 0, %s114
      %s129 = sphi 0, %s115
      %s133 = sphi 0, %s133
      %s135 = sphi 0, %s133
      %s136 = sphi 0, %s135
      %s150 = sphi 0, %s136
      %s156 = sphi 0, %s158
      %s159 = sphi 0, %s156
      %s160 = sphi 0, %s159
      %s176 = sphi 0, %s160
    $region4: #{tpu_custom_call.1} parent=1 // loop_header_branch
      %18 = sbr.rel (%p16) target = $region8
    $region5: #{tpu_custom_call.1} parent=1 // loop_body
      %s20 = ssub.s32 %s15, 1
      %s21 = ssub.s32 %s15, 2
      %s22 = sadd.s32 %s15, 1
      %s23 = ssub.s32 %s15, %s22
      %p24 = scmp.eq.s32.totalorder %s23, 0
      %s26 = sadd.s32 %s25, 1
      %s27 = scalar_select %p24, %s25, %s26
      %p30 = pneg %p24
      %p31 = scmp.eq.s32.totalorder %s15, 1
      %p32 = por %p30, %p31
      %p33 = scmp.ne.s32.totalorder %s25, %s28
      %p34 = scmp.eq.s32.totalorder %s15, 0
      %p35 = por %p33, %p34
      %p36 = scmp.ne.s32.totalorder %s25, %s28
      %p37 = scmp.eq.s32.totalorder %s20, 1
      %p38 = por %p36, %p37
      %p39 = scmp.ne.s32.totalorder %s28, %s29
      %p40 = scmp.eq.s32.totalorder %s20, 0
      %p41 = por %p39, %p40
      %p42 = scmp.ne.s32.totalorder %s28, %s29
      %p43 = scmp.eq.s32.totalorder %s21, 1
      %p44 = por %p42, %p43
      %p46 = scmp.ne.s32.totalorder %s29, %s45
      %p47 = scmp.eq.s32.totalorder %s21, 0
      %p48 = por %p46, %p47
      %s50 = sadd.s32 %s49, 1
      %p53 = scmp.eq.s32.totalorder %s15, 1
      %p54 = scmp.ne.s32.totalorder %s49, %s51
      %p55 = scmp.eq.s32.totalorder %s15, 0
      %p56 = por %p54, %p55
      %p57 = scmp.ne.s32.totalorder %s49, %s51
      %p58 = scmp.eq.s32.totalorder %s20, 1
      %p59 = por %p57, %p58
      %p60 = scmp.ne.s32.totalorder %s51, %s52
      %p61 = scmp.eq.s32.totalorder %s20, 0
      %p62 = por %p60, %p61
      %p63 = scmp.ne.s32.totalorder %s51, %s52
      %p64 = scmp.eq.s32.totalorder %s21, 1
      %p65 = por %p63, %p64
      %p67 = scmp.ne.s32.totalorder %s52, %s66
      %p68 = scmp.eq.s32.totalorder %s21, 0
      %p69 = por %p67, %p68
      %s71 = sadd.s32 %s70, 1
      %p74 = scmp.eq.s32.totalorder %s15, 1
      %p75 = scmp.ne.s32.totalorder %s70, %s72
      %p76 = scmp.eq.s32.totalorder %s15, 0
      %p77 = por %p75, %p76
      %p78 = scmp.ne.s32.totalorder %s70, %s72
      %p79 = scmp.eq.s32.totalorder %s20, 1
      %p80 = por %p78, %p79
      %p81 = scmp.ne.s32.totalorder %s72, %s73
      %p82 = scmp.eq.s32.totalorder %s20, 0
      %p83 = por %p81, %p82
      %p84 = scmp.ne.s32.totalorder %s72, %s73
      %p85 = scmp.eq.s32.totalorder %s21, 1
      %p86 = por %p84, %p85
      %p88 = scmp.ne.s32.totalorder %s73, %s87
      %p89 = scmp.eq.s32.totalorder %s21, 0
      %p90 = por %p88, %p89
      %s92 = sadd.s32 %s91, 1
      %p95 = scmp.eq.s32.totalorder %s15, 1
      %p96 = scmp.ne.s32.totalorder %s91, %s93
      %p97 = scmp.eq.s32.totalorder %s15, 0
      %p98 = por %p96, %p97
      %p99 = scmp.ne.s32.totalorder %s91, %s93
      %p100 = scmp.eq.s32.totalorder %s20, 1
      %p101 = por %p99, %p100
      %p102 = scmp.ne.s32.totalorder %s93, %s94
      %p103 = scmp.eq.s32.totalorder %s20, 0
      %p104 = por %p102, %p103
      %p105 = scmp.ne.s32.totalorder %s93, %s94
      %p106 = scmp.eq.s32.totalorder %s21, 1
      %p107 = por %p105, %p106
      %p109 = scmp.ne.s32.totalorder %s94, %s108
      %p110 = scmp.eq.s32.totalorder %s21, 0
      %p111 = por %p109, %p110
      %s113 = sadd.s32 %s112, 1
      %p116 = scmp.eq.s32.totalorder %s15, 1
      %p117 = scmp.ne.s32.totalorder %s112, %s114
      %p118 = scmp.eq.s32.totalorder %s15, 0
      %p119 = por %p117, %p118
      %p120 = scmp.ne.s32.totalorder %s112, %s114
      %p121 = scmp.eq.s32.totalorder %s20, 1
      %p122 = por %p120, %p121
      %p123 = scmp.ne.s32.totalorder %s114, %s115
      %p124 = scmp.eq.s32.totalorder %s20, 0
      %p125 = por %p123, %p124
      %p126 = scmp.ne.s32.totalorder %s114, %s115
      %p127 = scmp.eq.s32.totalorder %s21, 1
      %p128 = por %p126, %p127
      %p130 = scmp.ne.s32.totalorder %s115, %s129
      %p131 = scmp.eq.s32.totalorder %s21, 0
      %p132 = por %p130, %p131
      %s134 = sadd.s32 %s133, 1
      %p137 = scmp.eq.s32.totalorder %s15, 1
      %p138 = scmp.ne.s32.totalorder %s133, %s135
      %p139 = scmp.eq.s32.totalorder %s15, 0
      %p140 = por %p138, %p139
      %p141 = scmp.ne.s32.totalorder %s133, %s135
      %p142 = scmp.eq.s32.totalorder %s20, 1
      %p143 = por %p141, %p142
      %p144 = scmp.ne.s32.totalorder %s135, %s136
      %p145 = scmp.eq.s32.totalorder %s20, 0
      %p146 = por %p144, %p145
      %p147 = scmp.ne.s32.totalorder %s135, %s136
      %p148 = scmp.eq.s32.totalorder %s21, 1
      %p149 = por %p147, %p148
      %p151 = scmp.ne.s32.totalorder %s136, %s150
      %p152 = scmp.eq.s32.totalorder %s21, 0
      %p153 = por %p151, %p152
      %s154 = ssub.s32 %s15, %s22
      %p155 = scmp.eq.s32.totalorder %s154, 0
      %s157 = sadd.s32 %s156, 1
      %s158 = scalar_select %p155, %s156, %s157
      %p161 = pneg %p155
      %p162 = scmp.eq.s32.totalorder %s15, 1
      %p163 = por %p161, %p162
      %p164 = scmp.ne.s32.totalorder %s156, %s159
      %p165 = scmp.eq.s32.totalorder %s15, 0
      %p166 = por %p164, %p165
      %p167 = scmp.ne.s32.totalorder %s156, %s159
      %p168 = scmp.eq.s32.totalorder %s20, 1
      %p169 = por %p167, %p168
      %p170 = scmp.ne.s32.totalorder %s159, %s160
      %p171 = scmp.eq.s32.totalorder %s20, 0
      %p172 = por %p170, %p171
      %p173 = scmp.ne.s32.totalorder %s159, %s160
      %p174 = scmp.eq.s32.totalorder %s21, 1
      %p175 = por %p173, %p174
      %p177 = scmp.ne.s32.totalorder %s160, %s176
      %p178 = scmp.eq.s32.totalorder %s21, 0
      %p179 = por %p177, %p178
      %p180 = scmp.le.s32.totalorder 1, %s15
      %p181 = scmp.lt.s32.totalorder %s15, 3
      %p182 = pnand %p180, %p181
      %p183 = pneg %p182
      // Predicated region
      $region9: #{tpu_custom_call.1} parent=5 // pred_check
        _
      $region10: #{tpu_custom_call.1} parent=5 // pred_check_branch
        %185 = sbr.rel (%p182) target = $region12
      $region11: #{tpu_custom_call.1} parent=5 // pred_region
        %s186 = ssub.s32 %s15, 1
        // Predicated region
        $region13: #{tpu_custom_call.1} parent=11 // pred_check
          %p187 = pneg %p62
        $region14: #{tpu_custom_call.1} parent=11 // pred_check_branch
          %189 = sbr.rel (%p187) target = $region16
        $region15: #{tpu_custom_call.1} parent=11 // pred_region
          _
        $region16: #{tpu_custom_call.1} parent=11 // pred_fallthru
          _
        // Predicated region
        $region17: #{tpu_custom_call.1} parent=11 // pred_check
          %p190 = pneg %p83
        $region18: #{tpu_custom_call.1} parent=11 // pred_check_branch
          %192 = sbr.rel (%p190) target = $region20
        $region19: #{tpu_custom_call.1} parent=11 // pred_region
          _
        $region20: #{tpu_custom_call.1} parent=11 // pred_fallthru
          _
        // Predicated region
        $region21: #{tpu_custom_call.1} parent=11 // pred_check
          %p193 = pneg %p104
        $region22: #{tpu_custom_call.1} parent=11 // pred_check_branch
          %195 = sbr.rel (%p193) target = $region24
        $region23: #{tpu_custom_call.1} parent=11 // pred_region
          _
        $region24: #{tpu_custom_call.1} parent=11 // pred_fallthru
          _
        // Predicated region
        $region25: #{tpu_custom_call.1} parent=11 // pred_check
          %p196 = pneg %p125
        $region26: #{tpu_custom_call.1} parent=11 // pred_check_branch
          %198 = sbr.rel (%p196) target = $region28
        $region27: #{tpu_custom_call.1} parent=11 // pred_region
          _
        $region28: #{tpu_custom_call.1} parent=11 // pred_fallthru
          _
        // Predicated region
        $region29: #{tpu_custom_call.1} parent=11 // pred_check
          %p199 = pneg %p146
        $region30: #{tpu_custom_call.1} parent=11 // pred_check_branch
          %201 = sbr.rel (%p199) target = $region32
        $region31: #{tpu_custom_call.1} parent=11 // pred_region
          _
        $region32: #{tpu_custom_call.1} parent=11 // pred_fallthru
          _
      $region12: #{tpu_custom_call.1} parent=5 // pred_fallthru
        _
      %p202 = scmp.lt.s32.totalorder %s15, 2
      // Predicated region
      $region33: #{tpu_custom_call.1} parent=5 // pred_check
        %p203 = pneg %p202
      $region34: #{tpu_custom_call.1} parent=5 // pred_check_branch
        %205 = sbr.rel (%p203) target = $region36
      $region35: #{tpu_custom_call.1} parent=5 // pred_region
        // Predicated region
        $region37: #{tpu_custom_call.1} parent=35 // pred_check
          %p206 = pneg %p35
        $region38: #{tpu_custom_call.1} parent=35 // pred_check_branch
          %208 = sbr.rel (%p206) target = $region40
        $region39: #{tpu_custom_call.1} parent=35 // pred_region
          %p209 = scmp.lt.s32.totalorder %s15, 1
          %s210 = scalar_select %p209, %s15, 1
          %s211 = smul.addr %s210, 2
          %s212 = smul.addr %s211, 8
          %s213 = scalar_lea.vmem %s0, %s212
        $region40: #{tpu_custom_call.1} parent=35 // pred_fallthru
          _
      $region36: #{tpu_custom_call.1} parent=5 // pred_fallthru
        _
      %p214 = scmp.le.s32.totalorder 1, %s15
      %p215 = scmp.lt.s32.totalorder %s15, 3
      %p216 = pnand %p214, %p215
      %p217 = pneg %p216
      // Predicated region
      $region41: #{tpu_custom_call.1} parent=5 // pred_check
        _
      $region42: #{tpu_custom_call.1} parent=5 // pred_check_branch
        %219 = sbr.rel (%p216) target = $region44
      $region43: #{tpu_custom_call.1} parent=5 // pred_region
        %s220 = ssub.s32 %s15, 1
        %p221 = scmp.lt.s32.totalorder %s20, 1
        %s222 = scalar_select %p221, %s20, 1
        %s223 = smul.addr %s222, 2
        %s224 = smul.addr %s223, 8
        %s225 = scalar_lea.vmem %s0, %s224
        %p226 = pneg %p41
        %p227 = pneg %p38
        %p228 = pneg %p62
        %p229 = pneg %p59
        %p230 = pneg %p83
        %p231 = pneg %p80
        %p232 = pneg %p104
        %p233 = pneg %p101
        %p234 = pneg %p125
        %p235 = pneg %p122
        %p236 = pneg %p146
        %p237 = pneg %p143
        %p238 = pneg %p172
        %p239 = pneg %p169
        %s240 = sand.u32 %s159, 1
        %s241 = scalar_lea.sflag [#allocation3], %s240
        %s242 = sand.u32 %s159, 1
        %s243 = smul.addr %s242, 8
        %s244 = scalar_lea.vmem [#allocation2], %s243
        %p245 = scmp.lt.s32.totalorder %s20, 1
        %s246 = scalar_select %p245, %s20, 1
        %s247 = smul.addr %s246, 2
        %s248 = smul.addr %s247, 8
        %s249 = scalar_lea.vmem %s0, %s248
        %v250 = vld [vmem:[%s249] sm:$0xff]
        %v251 = vld [vmem:[%s249 + $0x8] sm:$0xff]
        %v252 = vld [vmem:[%s1] sm:$0xff]
        %v253 = vld [vmem:[%s1 + $0x8] sm:$0xff]
        %v254 = vld [vmem:[%s1 + $0x10] sm:$0xff]
        %v255 = vld [vmem:[%s1 + $0x18] sm:$0xff]
        %v256 = vld [vmem:[%s1 + $0x20] sm:$0xff]
        %v257 = vld [vmem:[%s1 + $0x28] sm:$0xff]
        %v258 = vld [vmem:[%s1 + $0x30] sm:$0xff]
        %v259 = vld [vmem:[%s1 + $0x38] sm:$0xff]
        %v260 = vld [vmem:[%s1 + $0x40] sm:$0xff]
        %v261 = vld [vmem:[%s1 + $0x48] sm:$0xff]
        %v262 = vld [vmem:[%s1 + $0x50] sm:$0xff]
        %v263 = vld [vmem:[%s1 + $0x58] sm:$0xff]
        %v264 = vld [vmem:[%s1 + $0x60] sm:$0xff]
        %v265 = vld [vmem:[%s1 + $0x68] sm:$0xff]
        %v266 = vld [vmem:[%s1 + $0x70] sm:$0xff]
        %v267 = vld [vmem:[%s1 + $0x78] sm:$0xff]
        %v268 = vld [vmem:[%s1 + $0x80] sm:$0xff]
        %v269 = vld [vmem:[%s1 + $0x88] sm:$0xff]
        %v270 = vld [vmem:[%s1 + $0x90] sm:$0xff]
        %v271 = vld [vmem:[%s1 + $0x98] sm:$0xff]
        %v272 = vld [vmem:[%s1 + $0xa0] sm:$0xff]
        %v273 = vld [vmem:[%s1 + $0xa8] sm:$0xff]
        %v274 = vld [vmem:[%s1 + $0xb0] sm:$0xff]
        %v275 = vld [vmem:[%s1 + $0xb8] sm:$0xff]
        %v276 = vld [vmem:[%s1 + $0xc0] sm:$0xff]
        %v277 = vld [vmem:[%s1 + $0xc8] sm:$0xff]
        %v278 = vld [vmem:[%s1 + $0xd0] sm:$0xff]
        %v279 = vld [vmem:[%s1 + $0xd8] sm:$0xff]
        %v280 = vld [vmem:[%s1 + $0xe0] sm:$0xff]
        %v281 = vld [vmem:[%s1 + $0xe8] sm:$0xff]
        %v282 = vld [vmem:[%s1 + $0xf0] sm:$0xff]
        %v283 = vld [vmem:[%s1 + $0xf8] sm:$0xff]
        %v284 = vld [vmem:[%s1 + $0x100] sm:$0xff]
        %v285 = vld [vmem:[%s1 + $0x108] sm:$0xff]
        %v286 = vld [vmem:[%s1 + $0x110] sm:$0xff]
        %v287 = vld [vmem:[%s1 + $0x118] sm:$0xff]
        %v288 = vld [vmem:[%s1 + $0x120] sm:$0xff]
        %v289 = vld [vmem:[%s1 + $0x128] sm:$0xff]
        %v290 = vld [vmem:[%s1 + $0x130] sm:$0xff]
        %v291 = vld [vmem:[%s1 + $0x138] sm:$0xff]
        %v292 = vld [vmem:[%s1 + $0x140] sm:$0xff]
        %v293 = vld [vmem:[%s1 + $0x148] sm:$0xff]
        %v294 = vld [vmem:[%s1 + $0x150] sm:$0xff]
        %v295 = vld [vmem:[%s1 + $0x158] sm:$0xff]
        %v296 = vld [vmem:[%s1 + $0x160] sm:$0xff]
        %v297 = vld [vmem:[%s1 + $0x168] sm:$0xff]
        %v298 = vld [vmem:[%s1 + $0x170] sm:$0xff]
        %v299 = vld [vmem:[%s1 + $0x178] sm:$0xff]
        %vm300 = vcmask 64512
        %v302 = vsel %vm300, %v252, 0
        %v305 = vsel %vm300, %v253, 0
        %v308 = vsel %vm300, %v254, 0
        %v311 = vsel %vm300, %v255, 0
        %v314 = vsel %vm300, %v256, 0
        %v317 = vsel %vm300, %v257, 0
        %v320 = vsel %vm300, %v258, 0
        %v323 = vsel %vm300, %v259, 0
        %v326 = vsel %vm300, %v260, 0
        %v329 = vsel %vm300, %v261, 0
        %v332 = vsel %vm300, %v262, 0
        %v335 = vsel %vm300, %v263, 0
        %v338 = vsel %vm300, %v264, 0
        %v341 = vsel %vm300, %v265, 0
        %v344 = vsel %vm300, %v266, 0
        %v347 = vsel %vm300, %v267, 0
        %v350 = vsel %vm300, %v268, 0
        %v353 = vsel %vm300, %v269, 0
        %v356 = vsel %vm300, %v270, 0
        %v359 = vsel %vm300, %v271, 0
        %v362 = vsel %vm300, %v272, 0
        %v365 = vsel %vm300, %v273, 0
        %v368 = vsel %vm300, %v274, 0
        %v371 = vsel %vm300, %v275, 0
        %v374 = vsel %vm300, %v276, 0
        %v377 = vsel %vm300, %v277, 0
        %v380 = vsel %vm300, %v278, 0
        %v383 = vsel %vm300, %v279, 0
        %v386 = vsel %vm300, %v280, 0
        %v389 = vsel %vm300, %v281, 0
        %v392 = vsel %vm300, %v282, 0
        %v395 = vsel %vm300, %v283, 0
        %v398 = vsel %vm300, %v284, 0
        %v401 = vsel %vm300, %v285, 0
        %v404 = vsel %vm300, %v286, 0
        %v407 = vsel %vm300, %v287, 0
        %v410 = vsel %vm300, %v288, 0
        %v413 = vsel %vm300, %v289, 0
        %v416 = vsel %vm300, %v290, 0
        %v419 = vsel %vm300, %v291, 0
        %v422 = vsel %vm300, %v292, 0
        %v425 = vsel %vm300, %v293, 0
        %v428 = vsel %vm300, %v294, 0
        %v431 = vsel %vm300, %v295, 0
        %v434 = vsel %vm300, %v296, 0
        %v437 = vsel %vm300, %v297, 0
        %v440 = vsel %vm300, %v298, 0
        %v443 = vsel %vm300, %v299, 0
        %445 = vmatprep.subr.mxu0 %v251
        %446 = vmatpush1.msra.mxu0 %v250
        %447 = vmatprep.subr.mxu0 0.0
        %448 = vmatpush1.msra.mxu0 0.0
        %449 = vmatprep.subr.mxu0 0.0
        %450 = vmatpush1.msra.mxu0 0.0
        %451 = vmatprep.subr.mxu0 0.0
        %452 = vmatpush1.msra.mxu0 0.0
        %453 = vmatprep.subr.mxu0 0.0
        %454 = vmatpush1.msra.mxu0 0.0
        %455 = vmatprep.subr.mxu0 0.0
        %456 = vmatpush1.msra.mxu0 0.0
        %457 = vmatprep.subr.mxu0 0.0
        %458 = vmatpush1.msra.mxu0 0.0
        %459 = vmatprep.subr.mxu0 0.0
        %460 = vmatpush1.msra.mxu0 0.0
        %461 = vmatprep.subr.mxu0 0.0
        %462 = vmatpush1.msra.mxu0 0.0
        %463 = vmatprep.subr.mxu0 0.0
        %464 = vmatpush1.msra.mxu0 0.0
        %465 = vmatprep.subr.mxu0 0.0
        %466 = vmatpush1.msra.mxu0 0.0
        %467 = vmatprep.subr.mxu0 0.0
        %468 = vmatpush1.msra.mxu0 0.0
        %469 = vmatprep.subr.mxu0 0.0
        %470 = vmatpush1.msra.mxu0 0.0
        %471 = vmatprep.subr.mxu0 0.0
        %472 = vmatpush1.msra.mxu0 0.0
        %473 = vmatprep.subr.mxu0 0.0
        %474 = vmatpush1.msra.mxu0 0.0
        %475 = vmatprep.subr.mxu0 0.0
        %476 = vmatpush1.msra.mxu0 0.0
        %477 = vmatprep.subr.mxu0 0.0
        %478 = vmatpush1.msra.mxu0 0.0
        %479 = vmatprep.subr.mxu0 0.0
        %480 = vmatpush1.msra.mxu0 0.0
        %481 = vmatprep.subr.mxu0 0.0
        %482 = vmatpush1.msra.mxu0 0.0
        %483 = vmatprep.subr.mxu0 0.0
        %484 = vmatpush1.msra.mxu0 0.0
        %485 = vmatprep.subr.mxu0 0.0
        %486 = vmatpush1.msra.mxu0 0.0
        %487 = vmatprep.subr.mxu0 0.0
        %488 = vmatpush1.msra.mxu0 0.0
        %489 = vmatprep.subr.mxu0 0.0
        %490 = vmatpush1.msra.mxu0 0.0
        %491 = vmatprep.subr.mxu0 0.0
        %492 = vmatpush1.msra.mxu0 0.0
        %493 = vmatprep.subr.mxu0 0.0
        %494 = vmatpush1.msra.mxu0 0.0
        %495 = vmatprep.subr.mxu0 0.0
        %496 = vmatpush1.msra.mxu0 0.0
        %497 = vmatprep.subr.mxu0 0.0
        %498 = vmatpush1.msra.mxu0 0.0
        %499 = vmatprep.subr.mxu0 0.0
        %500 = vmatpush1.msra.mxu0 0.0
        %501 = vmatprep.subr.mxu0 0.0
        %502 = vmatpush1.msra.mxu0 0.0
        %503 = vmatprep.subr.mxu0 0.0
        %504 = vmatpush1.msra.mxu0 0.0
        %505 = vmatprep.subr.mxu0 0.0
        %506 = vmatpush1.msra.mxu0 0.0
        %507 = vmatprep.subr.mxu0 0.0
        %508 = vmatpush1.msra.mxu0 0.0
        %509 = vmatprep.mubr.f32.mxu0 0.0
        %510 = vmatmul.mubr.f32.gmra.mrb[0].mxu0 %v302
        %v511 = vpop.f32.mrb[0].mxu0
        %v512 = vadd.f32 0.0, %v511
        %v513 = vpop.f32.mrb[0].mxu0
        %v514 = vadd.f32 0.0, %v513
        %515 = vmatprep.mubr.f32.mxu0 0.0
        %516 = vmatmul.mubr.f32.gmra.mrb[0].mxu0 %v305
        %v517 = vpop.f32.mrb[0].mxu0
        %v518 = vadd.f32 0.0, %v517
        %v519 = vpop.f32.mrb[0].mxu0
        %v520 = vadd.f32 0.0, %v519
        %521 = vmatprep.mubr.f32.mxu0 0.0
        %522 = vmatmul.mubr.f32.gmra.mrb[0].mxu0 %v308
        %v523 = vpop.f32.mrb[0].mxu0
        %v524 = vadd.f32 0.0, %v523
        %v525 = vpop.f32.mrb[0].mxu0
        %v526 = vadd.f32 0.0, %v525
        %527 = vmatprep.mubr.f32.mxu0 0.0
        %528 = vmatmul.mubr.f32.gmra.mrb[0].mxu0 %v311
        %v529 = vpop.f32.mrb[0].mxu0
        %v530 = vadd.f32 0.0, %v529
        %v531 = vpop.f32.mrb[0].mxu0
        %v532 = vadd.f32 0.0, %v531
        %533 = vmatprep.mubr.f32.mxu0 0.0
        %534 = vmatmul.mubr.f32.gmra.mrb[0].mxu0 %v314
        %v535 = vpop.f32.mrb[0].mxu0
        %v536 = vadd.f32 0.0, %v535
        %v537 = vpop.f32.mrb[0].mxu0
        %v538 = vadd.f32 0.0, %v537
        %539 = vmatprep.mubr.f32.mxu0 0.0
        %540 = vmatmul.mubr.f32.gmra.mrb[0].mxu0 %v317
        %v541 = vpop.f32.mrb[0].mxu0
        %v542 = vadd.f32 0.0, %v541
        %v543 = vpop.f32.mrb[0].mxu0
        %v544 = vadd.f32 0.0, %v543
        %545 = vmatprep.mubr.f32.mxu0 0.0
        %546 = vmatmul.mubr.f32.gmra.mrb[0].mxu0 %v320
        %v547 = vpop.f32.mrb[0].mxu0
        %v548 = vadd.f32 0.0, %v547
        %v549 = vpop.f32.mrb[0].mxu0
        %v550 = vadd.f32 0.0, %v549
        %551 = vmatprep.mubr.f32.mxu0 0.0
        %552 = vmatmul.mubr.f32.gmra.mrb[0].mxu0 %v323
        %v553 = vpop.f32.mrb[0].mxu0
        %v554 = vadd.f32 0.0, %v553
        %v555 = vpop.f32.mrb[0].mxu0
        %v556 = vadd.f32 0.0, %v555
        %557 = vmatprep.mubr.f32.mxu0 0.0
        %558 = vmatmul.mubr.f32.gmra.mrb[0].mxu0 %v326
        %v559 = vpop.f32.mrb[0].mxu0
        %v560 = vadd.f32 0.0, %v559
        %v561 = vpop.f32.mrb[0].mxu0
        %v562 = vadd.f32 0.0, %v561
        %563 = vmatprep.mubr.f32.mxu0 0.0
        %564 = vmatmul.mubr.f32.gmra.mrb[0].mxu0 %v329
        %v565 = vpop.f32.mrb[0].mxu0
        %v566 = vadd.f32 0.0, %v565
        %v567 = vpop.f32.mrb[0].mxu0
        %v568 = vadd.f32 0.0, %v567
        %569 = vmatprep.mubr.f32.mxu0 0.0
        %570 = vmatmul.mubr.f32.gmra.mrb[0].mxu0 %v332
        %v571 = vpop.f32.mrb[0].mxu0
        %v572 = vadd.f32 0.0, %v571
        %v573 = vpop.f32.mrb[0].mxu0
        %v574 = vadd.f32 0.0, %v573
        %575 = vmatprep.mubr.f32.mxu0 0.0
        %576 = vmatmul.mubr.f32.gmra.mrb[0].mxu0 %v335
        %v577 = vpop.f32.mrb[0].mxu0
        %v578 = vadd.f32 0.0, %v577
        %v579 = vpop.f32.mrb[0].mxu0
        %v580 = vadd.f32 0.0, %v579
        %581 = vmatprep.mubr.f32.mxu0 0.0
        %582 = vmatmul.mubr.f32.gmra.mrb[0].mxu0 %v338
        %v583 = vpop.f32.mrb[0].mxu0
        %v584 = vadd.f32 0.0, %v583
        %v585 = vpop.f32.mrb[0].mxu0
        %v586 = vadd.f32 0.0, %v585
        %587 = vmatprep.mubr.f32.mxu0 0.0
        %588 = vmatmul.mubr.f32.gmra.mrb[0].mxu0 %v341
        %v589 = vpop.f32.mrb[0].mxu0
        %v590 = vadd.f32 0.0, %v589
        %v591 = vpop.f32.mrb[0].mxu0
        %v592 = vadd.f32 0.0, %v591
        %593 = vmatprep.mubr.f32.mxu0 0.0
        %594 = vmatmul.mubr.f32.gmra.mrb[0].mxu0 %v344
        %v595 = vpop.f32.mrb[0].mxu0
        %v596 = vadd.f32 0.0, %v595
        %v597 = vpop.f32.mrb[0].mxu0
        %v598 = vadd.f32 0.0, %v597
        %599 = vmatprep.mubr.f32.mxu0 0.0
        %600 = vmatmul.mubr.f32.gmra.mrb[0].mxu0 %v347
        %v601 = vpop.f32.mrb[0].mxu0
        %v602 = vadd.f32 0.0, %v601
        %v603 = vpop.f32.mrb[0].mxu0
        %v604 = vadd.f32 0.0, %v603
        %605 = vmatprep.mubr.f32.mxu0 0.0
        %606 = vmatmul.mubr.f32.gmra.mrb[0].mxu0 %v350
        %v607 = vpop.f32.mrb[0].mxu0
        %v608 = vadd.f32 0.0, %v607
        %v609 = vpop.f32.mrb[0].mxu0
        %v610 = vadd.f32 0.0, %v609
        %611 = vmatprep.mubr.f32.mxu0 0.0
        %612 = vmatmul.mubr.f32.gmra.mrb[0].mxu0 %v353
        %v613 = vpop.f32.mrb[0].mxu0
        %v614 = vadd.f32 0.0, %v613
        %v615 = vpop.f32.mrb[0].mxu0
        %v616 = vadd.f32 0.0, %v615
        %617 = vmatprep.mubr.f32.mxu0 0.0
        %618 = vmatmul.mubr.f32.gmra.mrb[0].mxu0 %v356
        %v619 = vpop.f32.mrb[0].mxu0
        %v620 = vadd.f32 0.0, %v619
        %v621 = vpop.f32.mrb[0].mxu0
        %v622 = vadd.f32 0.0, %v621
        %623 = vmatprep.mubr.f32.mxu0 0.0
        %624 = vmatmul.mubr.f32.gmra.mrb[0].mxu0 %v359
        %v625 = vpop.f32.mrb[0].mxu0
        %v626 = vadd.f32 0.0, %v625
        %v627 = vpop.f32.mrb[0].mxu0
        %v628 = vadd.f32 0.0, %v627
        %629 = vmatprep.mubr.f32.mxu0 0.0
        %630 = vmatmul.mubr.f32.gmra.mrb[0].mxu0 %v362
        %v631 = vpop.f32.mrb[0].mxu0
        %v632 = vadd.f32 0.0, %v631
        %v633 = vpop.f32.mrb[0].mxu0
        %v634 = vadd.f32 0.0, %v633
        %635 = vmatprep.mubr.f32.mxu0 0.0
        %636 = vmatmul.mubr.f32.gmra.mrb[0].mxu0 %v365
        %v637 = vpop.f32.mrb[0].mxu0
        %v638 = vadd.f32 0.0, %v637
        %v639 = vpop.f32.mrb[0].mxu0
        %v640 = vadd.f32 0.0, %v639
        %641 = vmatprep.mubr.f32.mxu0 0.0
        %642 = vmatmul.mubr.f32.gmra.mrb[0].mxu0 %v368
        %v643 = vpop.f32.mrb[0].mxu0
        %v644 = vadd.f32 0.0, %v643
        %v645 = vpop.f32.mrb[0].mxu0
        %v646 = vadd.f32 0.0, %v645
        %647 = vmatprep.mubr.f32.mxu0 0.0
        %648 = vmatmul.mubr.f32.gmra.mrb[0].mxu0 %v371
        %v649 = vpop.f32.mrb[0].mxu0
        %v650 = vadd.f32 0.0, %v649
        %v651 = vpop.f32.mrb[0].mxu0
        %v652 = vadd.f32 0.0, %v651
        %653 = vmatprep.mubr.f32.mxu0 0.0
        %654 = vmatmul.mubr.f32.gmra.mrb[0].mxu0 %v374
        %v655 = vpop.f32.mrb[0].mxu0
        %v656 = vadd.f32 0.0, %v655
        %v657 = vpop.f32.mrb[0].mxu0
        %v658 = vadd.f32 0.0, %v657
        %659 = vmatprep.mubr.f32.mxu0 0.0
        %660 = vmatmul.mubr.f32.gmra.mrb[0].mxu0 %v377
        %v661 = vpop.f32.mrb[0].mxu0
        %v662 = vadd.f32 0.0, %v661
        %v663 = vpop.f32.mrb[0].mxu0
        %v664 = vadd.f32 0.0, %v663
        %665 = vmatprep.mubr.f32.mxu0 0.0
        %666 = vmatmul.mubr.f32.gmra.mrb[0].mxu0 %v380
        %v667 = vpop.f32.mrb[0].mxu0
        %v668 = vadd.f32 0.0, %v667
        %v669 = vpop.f32.mrb[0].mxu0
        %v670 = vadd.f32 0.0, %v669
        %671 = vmatprep.mubr.f32.mxu0 0.0
        %672 = vmatmul.mubr.f32.gmra.mrb[0].mxu0 %v383
        %v673 = vpop.f32.mrb[0].mxu0
        %v674 = vadd.f32 0.0, %v673
        %v675 = vpop.f32.mrb[0].mxu0
        %v676 = vadd.f32 0.0, %v675
        %677 = vmatprep.mubr.f32.mxu0 0.0
        %678 = vmatmul.mubr.f32.gmra.mrb[0].mxu0 %v386
        %v679 = vpop.f32.mrb[0].mxu0
        %v680 = vadd.f32 0.0, %v679
        %v681 = vpop.f32.mrb[0].mxu0
        %v682 = vadd.f32 0.0, %v681
        %683 = vmatprep.mubr.f32.mxu0 0.0
        %684 = vmatmul.mubr.f32.gmra.mrb[0].mxu0 %v389
        %v685 = vpop.f32.mrb[0].mxu0
        %v686 = vadd.f32 0.0, %v685
        %v687 = vpop.f32.mrb[0].mxu0
        %v688 = vadd.f32 0.0, %v687
        %689 = vmatprep.mubr.f32.mxu0 0.0
        %690 = vmatmul.mubr.f32.gmra.mrb[0].mxu0 %v392
        %v691 = vpop.f32.mrb[0].mxu0
        %v692 = vadd.f32 0.0, %v691
        %v693 = vpop.f32.mrb[0].mxu0
        %v694 = vadd.f32 0.0, %v693
        %695 = vmatprep.mubr.f32.mxu0 0.0
        %696 = vmatmul.mubr.f32.gmra.mrb[0].mxu0 %v395
        %v697 = vpop.f32.mrb[0].mxu0
        %v698 = vadd.f32 0.0, %v697
        %v699 = vpop.f32.mrb[0].mxu0
        %v700 = vadd.f32 0.0, %v699
        %701 = vmatprep.mubr.f32.mxu0 0.0
        %702 = vmatmul.mubr.f32.gmra.mrb[0].mxu0 %v398
        %v703 = vpop.f32.mrb[0].mxu0
        %v704 = vadd.f32 0.0, %v703
        %v705 = vpop.f32.mrb[0].mxu0
        %v706 = vadd.f32 0.0, %v705
        %707 = vmatprep.mubr.f32.mxu0 0.0
        %708 = vmatmul.mubr.f32.gmra.mrb[0].mxu0 %v401
        %v709 = vpop.f32.mrb[0].mxu0
        %v710 = vadd.f32 0.0, %v709
        %v711 = vpop.f32.mrb[0].mxu0
        %v712 = vadd.f32 0.0, %v711
        %713 = vmatprep.mubr.f32.mxu0 0.0
        %714 = vmatmul.mubr.f32.gmra.mrb[0].mxu0 %v404
        %v715 = vpop.f32.mrb[0].mxu0
        %v716 = vadd.f32 0.0, %v715
        %v717 = vpop.f32.mrb[0].mxu0
        %v718 = vadd.f32 0.0, %v717
        %719 = vmatprep.mubr.f32.mxu0 0.0
        %720 = vmatmul.mubr.f32.gmra.mrb[0].mxu0 %v407
        %v721 = vpop.f32.mrb[0].mxu0
        %v722 = vadd.f32 0.0, %v721
        %v723 = vpop.f32.mrb[0].mxu0
        %v724 = vadd.f32 0.0, %v723
        %725 = vmatprep.mubr.f32.mxu0 0.0
        %726 = vmatmul.mubr.f32.gmra.mrb[0].mxu0 %v410
        %v727 = vpop.f32.mrb[0].mxu0
        %v728 = vadd.f32 0.0, %v727
        %v729 = vpop.f32.mrb[0].mxu0
        %v730 = vadd.f32 0.0, %v729
        %731 = vmatprep.mubr.f32.mxu0 0.0
        %732 = vmatmul.mubr.f32.gmra.mrb[0].mxu0 %v413
        %v733 = vpop.f32.mrb[0].mxu0
        %v734 = vadd.f32 0.0, %v733
        %v735 = vpop.f32.mrb[0].mxu0
        %v736 = vadd.f32 0.0, %v735
        %737 = vmatprep.mubr.f32.mxu0 0.0
        %738 = vmatmul.mubr.f32.gmra.mrb[0].mxu0 %v416
        %v739 = vpop.f32.mrb[0].mxu0
        %v740 = vadd.f32 0.0, %v739
        %v741 = vpop.f32.mrb[0].mxu0
        %v742 = vadd.f32 0.0, %v741
        %743 = vmatprep.mubr.f32.mxu0 0.0
        %744 = vmatmul.mubr.f32.gmra.mrb[0].mxu0 %v419
        %v745 = vpop.f32.mrb[0].mxu0
        %v746 = vadd.f32 0.0, %v745
        %v747 = vpop.f32.mrb[0].mxu0
        %v748 = vadd.f32 0.0, %v747
        %749 = vmatprep.mubr.f32.mxu0 0.0
        %750 = vmatmul.mubr.f32.gmra.mrb[0].mxu0 %v422
        %v751 = vpop.f32.mrb[0].mxu0
        %v752 = vadd.f32 0.0, %v751
        %v753 = vpop.f32.mrb[0].mxu0
        %v754 = vadd.f32 0.0, %v753
        %755 = vmatprep.mubr.f32.mxu0 0.0
        %756 = vmatmul.mubr.f32.gmra.mrb[0].mxu0 %v425
        %v757 = vpop.f32.mrb[0].mxu0
        %v758 = vadd.f32 0.0, %v757
        %v759 = vpop.f32.mrb[0].mxu0
        %v760 = vadd.f32 0.0, %v759
        %761 = vmatprep.mubr.f32.mxu0 0.0
        %762 = vmatmul.mubr.f32.gmra.mrb[0].mxu0 %v428
        %v763 = vpop.f32.mrb[0].mxu0
        %v764 = vadd.f32 0.0, %v763
        %v765 = vpop.f32.mrb[0].mxu0
        %v766 = vadd.f32 0.0, %v765
        %767 = vmatprep.mubr.f32.mxu0 0.0
        %768 = vmatmul.mubr.f32.gmra.mrb[0].mxu0 %v431
        %v769 = vpop.f32.mrb[0].mxu0
        %v770 = vadd.f32 0.0, %v769
        %v771 = vpop.f32.mrb[0].mxu0
        %v772 = vadd.f32 0.0, %v771
        %773 = vmatprep.mubr.f32.mxu0 0.0
        %774 = vmatmul.mubr.f32.gmra.mrb[0].mxu0 %v434
        %v775 = vpop.f32.mrb[0].mxu0
        %v776 = vadd.f32 0.0, %v775
        %v777 = vpop.f32.mrb[0].mxu0
        %v778 = vadd.f32 0.0, %v777
        %779 = vmatprep.mubr.f32.mxu0 0.0
        %780 = vmatmul.mubr.f32.gmra.mrb[0].mxu0 %v437
        %v781 = vpop.f32.mrb[0].mxu0
        %v782 = vadd.f32 0.0, %v781
        %v783 = vpop.f32.mrb[0].mxu0
        %v784 = vadd.f32 0.0, %v783
        %785 = vmatprep.mubr.f32.mxu0 0.0
        %786 = vmatmul.mubr.f32.gmra.mrb[0].mxu0 %v440
        %v787 = vpop.f32.mrb[0].mxu0
        %v788 = vadd.f32 0.0, %v787
        %v789 = vpop.f32.mrb[0].mxu0
        %v790 = vadd.f32 0.0, %v789
        %791 = vmatprep.mubr.f32.mxu0 0.0
        %792 = vmatmul.mubr.f32.gmra.mrb[0].mxu0 %v443
        %v793 = vpop.f32.mrb[0].mxu0
        %v794 = vadd.f32 0.0, %v793
        %v795 = vpop.f32.mrb[0].mxu0
        %v796 = vadd.f32 0.0, %v795
        %797 = vdwg.mxu0
        %v798 = vmax.f32 %v512, %v524
        %v799 = vmax.f32 %v518, %v530
        %v800 = vmax.f32 %v798, %v799
        %v801 = vrot.slane %v800, 4
        %v802 = vmax.f32 %v800, %v801
        %v803 = vrot.slane %v802, 2
        %v804 = vmax.f32 %v802, %v803
        %v805 = vrot.slane %v804, 1
        %v806 = vmax.f32 %v804, %v805
        %v807 = vmax.f32 %v514, %v526
        %v808 = vmax.f32 %v520, %v532
        %v809 = vmax.f32 %v807, %v808
        %v810 = vrot.slane %v809, 4
        %v811 = vmax.f32 %v809, %v810
        %v812 = vrot.slane %v811, 2
        %v813 = vmax.f32 %v811, %v812
        %v814 = vrot.slane %v813, 1
        %v815 = vmax.f32 %v813, %v814
        %v816 = vsub.f32 %v512, %v806
        %v817 = vsub.f32 %v514, %v815
        %v818 = vsub.f32 %v518, %v806
        %v819 = vsub.f32 %v520, %v815
        %v820 = vsub.f32 %v524, %v806
        %v821 = vsub.f32 %v526, %v815
        %v822 = vsub.f32 %v530, %v806
        %v823 = vsub.f32 %v532, %v815
        %v824 = vmul.f32 %v816, 1.442695
        %v825 = vpow.pop %v824
        %v826 = vmul.f32 %v817, 1.442695
        %v827 = vpow.pop %v826
        %v828 = vmul.f32 %v818, 1.442695
        %v829 = vpow.pop %v828
        %v830 = vmul.f32 %v819, 1.442695
        %v831 = vpow.pop %v830
        %v832 = vmul.f32 %v820, 1.442695
        %v833 = vpow.pop %v832
        %v834 = vmul.f32 %v821, 1.442695
        %v835 = vpow.pop %v834
        %v836 = vmul.f32 %v822, 1.442695
        %v837 = vpow.pop %v836
        %v838 = vmul.f32 %v823, 1.442695
        %v839 = vpow.pop %v838
        %v840 = vadd.f32 %v825, %v829
        %v841 = vadd.f32 %v840, %v833
        %v842 = vadd.f32 %v841, %v837
        %v843 = vrot.slane %v842, 4
        %v844 = vadd.f32 %v842, %v843
        %v845 = vrot.slane %v844, 2
        %v846 = vadd.f32 %v844, %v845
        %v847 = vrot.slane %v846, 1
        %v848 = vadd.f32 %v846, %v847
        %v849 = vadd.f32 %v827, %v831
        %v850 = vadd.f32 %v849, %v835
        %v851 = vadd.f32 %v850, %v839
        %v852 = vrot.slane %v851, 4
        %v853 = vadd.f32 %v851, %v852
        %v854 = vrot.slane %v853, 2
        %v855 = vadd.f32 %v853, %v854
        %v856 = vrot.slane %v855, 1
        %v857 = vadd.f32 %v855, %v856
        %v858 = vrcp.pop %v848
        %v859 = vmul.f32 %v825, %v858
        %v860 = vrcp.pop %v857
        %v861 = vmul.f32 %v827, %v860
        %v862 = vmul.f32 %v829, %v858
        %v863 = vmul.f32 %v831, %v860
        %v864 = vmul.f32 %v833, %v858
        %v865 = vmul.f32 %v835, %v860
        %v866 = vmul.f32 %v837, %v858
        %v867 = vmul.f32 %v839, %v860
        %v868 = vmul.f32 %v859, 0.17677669
        %v869 = vmul.f32 %v861, 0.17677669
        %v870 = vmul.f32 %v862, 0.17677669
        %v871 = vmul.f32 %v863, 0.17677669
        %v872 = vmul.f32 %v864, 0.17677669
        %v873 = vmul.f32 %v865, 0.17677669
        %v874 = vmul.f32 %v866, 0.17677669
        %v875 = vmul.f32 %v867, 0.17677669
        %v876 = vmax.f32 %v608, %v610
        %877 = vmax.xlane.f32.xlu0 %v876
        %v878 = vpop.xlane.xlu0 %877
        %v879 = vmax.f32 %v614, %v616
        %880 = vmax.xlane.f32.xlu0 %v879
        %v881 = vpop.xlane.xlu0 %880
        %v882 = vmax.f32 %v620, %v622
        %883 = vmax.xlane.f32.xlu0 %v882
        %v884 = vpop.xlane.xlu0 %883
        %v885 = vmax.f32 %v626, %v628
        %886 = vmax.xlane.f32.xlu0 %v885
        %v887 = vpop.xlane.xlu0 %886
        %v888 = vsub.f32 %v608, %v878
        %v889 = vsub.f32 %v610, %v878
        %v890 = vsub.f32 %v614, %v881
        %v891 = vsub.f32 %v616, %v881
        %v892 = vsub.f32 %v620, %v884
        %v893 = vsub.f32 %v622, %v884
        %v894 = vsub.f32 %v626, %v887
        %v895 = vsub.f32 %v628, %v887
        %v896 = vmul.f32 %v888, 1.442695
        %v897 = vpow.pop %v896
        %v898 = vmul.f32 %v889, 1.442695
        %v899 = vpow.pop %v898
        %v900 = vmul.f32 %v890, 1.442695
        %v901 = vpow.pop %v900
        %v902 = vmul.f32 %v891, 1.442695
        %v903 = vpow.pop %v902
        %v904 = vmul.f32 %v892, 1.442695
        %v905 = vpow.pop %v904
        %v906 = vmul.f32 %v893, 1.442695
        %v907 = vpow.pop %v906
        %v908 = vmul.f32 %v894, 1.442695
        %v909 = vpow.pop %v908
        %v910 = vmul.f32 %v895, 1.442695
        %v911 = vpow.pop %v910
        %v912 = vadd.f32 %v897, %v899
        %913 = vadd.xlane.f32.xlu0 %v912
        %v914 = vpop.xlane.xlu0 %913
        %v915 = vadd.f32 %v901, %v903
        %916 = vadd.xlane.f32.xlu0 %v915
        %v917 = vpop.xlane.xlu0 %916
        %v918 = vadd.f32 %v905, %v907
        %919 = vadd.xlane.f32.xlu0 %v918
        %v920 = vpop.xlane.xlu0 %919
        %v921 = vadd.f32 %v909, %v911
        %922 = vadd.xlane.f32.xlu0 %v921
        %v923 = vpop.xlane.xlu0 %922
        %v924 = vrcp.pop %v914
        %v925 = vmul.f32 %v897, %v924
        %v926 = vmul.f32 %v899, %v924
        %v927 = vrcp.pop %v917
        %v928 = vmul.f32 %v901, %v927
        %v929 = vmul.f32 %v903, %v927
        %v930 = vrcp.pop %v920
        %v931 = vmul.f32 %v905, %v930
        %v932 = vmul.f32 %v907, %v930
        %v933 = vrcp.pop %v923
        %v934 = vmul.f32 %v909, %v933
        %v935 = vmul.f32 %v911, %v933
        %936 = vmatprep.subr.mxu0 %v706
        %937 = vmatpush1.xpose.msra.mxu0 %v704
        %938 = vmatprep.subr.mxu0 %v712
        %939 = vmatpush1.xpose.msra.mxu0 %v710
        %940 = vmatprep.subr.mxu0 %v718
        %941 = vmatpush1.xpose.msra.mxu0 %v716
        %942 = vmatprep.subr.mxu0 %v724
        %943 = vmatpush1.xpose.msra.mxu0 %v722
        %944 = vmatprep.subr.mxu0 0.0
        %945 = vmatpush1.xpose.msra.mxu0 0.0
        %946 = vmatprep.subr.mxu0 0.0
        %947 = vmatpush1.xpose.msra.mxu0 0.0
        %948 = vmatprep.subr.mxu0 0.0
        %949 = vmatpush1.xpose.msra.mxu0 0.0
        %950 = vmatprep.subr.mxu0 0.0
        %951 = vmatpush1.xpose.msra.mxu0 0.0
        %952 = vmatprep.subr.mxu0 0.0
        %953 = vmatpush1.xpose.msra.mxu0 0.0
        %954 = vmatprep.subr.mxu0 0.0
        %955 = vmatpush1.xpose.msra.mxu0 0.0
        %956 = vmatprep.subr.mxu0 0.0
        %957 = vmatpush1.xpose.msra.mxu0 0.0
        %958 = vmatprep.subr.mxu0 0.0
        %959 = vmatpush1.xpose.msra.mxu0 0.0
        %960 = vmatprep.subr.mxu0 0.0
        %961 = vmatpush1.xpose.msra.mxu0 0.0
        %962 = vmatprep.subr.mxu0 0.0
        %963 = vmatpush1.xpose.msra.mxu0 0.0
        %964 = vmatprep.subr.mxu0 0.0
        %965 = vmatpush1.xpose.msra.mxu0 0.0
        %966 = vmatprep.subr.mxu0 0.0
        %967 = vmatpush1.xpose.msra.mxu0 0.0
        %968 = vmatprep.subr.mxu0 0.0
        %969 = vmatpush1.xpose.msra.mxu0 0.0
        %970 = vmatprep.subr.mxu0 0.0
        %971 = vmatpush1.xpose.msra.mxu0 0.0
        %972 = vmatprep.subr.mxu0 0.0
        %973 = vmatpush1.xpose.msra.mxu0 0.0
        %974 = vmatprep.subr.mxu0 0.0
        %975 = vmatpush1.xpose.msra.mxu0 0.0
        %976 = vmatprep.subr.mxu0 0.0
        %977 = vmatpush1.xpose.msra.mxu0 0.0
        %978 = vmatprep.subr.mxu0 0.0
        %979 = vmatpush1.xpose.msra.mxu0 0.0
        %980 = vmatprep.subr.mxu0 0.0
        %981 = vmatpush1.xpose.msra.mxu0 0.0
        %982 = vmatprep.subr.mxu0 0.0
        %983 = vmatpush1.xpose.msra.mxu0 0.0
        %984 = vmatprep.subr.mxu0 0.0
        %985 = vmatpush1.xpose.msra.mxu0 0.0
        %986 = vmatprep.subr.mxu0 0.0
        %987 = vmatpush1.xpose.msra.mxu0 0.0
        %988 = vmatprep.subr.mxu0 0.0
        %989 = vmatpush1.xpose.msra.mxu0 0.0
        %990 = vmatprep.subr.mxu0 0.0
        %991 = vmatpush1.xpose.msra.mxu0 0.0
        %992 = vmatprep.subr.mxu0 0.0
        %993 = vmatpush1.xpose.msra.mxu0 0.0
        %994 = vmatprep.subr.mxu0 0.0
        %995 = vmatpush1.xpose.msra.mxu0 0.0
        %996 = vmatprep.subr.mxu0 0.0
        %997 = vmatpush1.xpose.msra.mxu0 0.0
        %998 = vmatprep.subr.mxu0 0.0
        %999 = vmatpush1.xpose.msra.mxu0 0.0
        %1000 = vmatprep.mubr.f32.mxu0 %v926
        %1001 = vmatmul.mubr.f32.gmra.mrb[0].mxu0 %v925
        %v1002 = vpop.f32.mrb[0].mxu0
        %v1003 = vadd.f32 0.0, %v1002
        %v1004 = vpop.f32.mrb[0].mxu0
        %1005 = vmatprep.mubr.f32.mxu0 %v929
        %1006 = vmatmul.mubr.f32.gmra.mrb[0].mxu0 %v928
        %v1007 = vpop.f32.mrb[0].mxu0
        %v1008 = vadd.f32 0.0, %v1007
        %v1009 = vpop.f32.mrb[0].mxu0
        %1010 = vmatprep.mubr.f32.mxu0 %v932
        %1011 = vmatmul.mubr.f32.gmra.mrb[0].mxu0 %v931
        %v1012 = vpop.f32.mrb[0].mxu0
        %v1013 = vadd.f32 0.0, %v1012
        %v1014 = vpop.f32.mrb[0].mxu0
        %1015 = vmatprep.mubr.f32.mxu0 %v935
        %1016 = vmatmul.mubr.f32.gmra.mrb[0].mxu0 %v934
        %v1017 = vpop.f32.mrb[0].mxu0
        %v1018 = vadd.f32 0.0, %v1017
        %v1019 = vpop.f32.mrb[0].mxu0
        %1020 = vdwg.mxu0
        %1021 = vxpose.xlu0.b32.start [1/16] %v1003, 128
        %1022 = vxpose.xlu0.b32.cont [2/16] %v1008, 128
        %1023 = vxpose.xlu0.b32.cont [3/16] %v1013, 128
        %1024 = vxpose.xlu0.b32.cont [4/16] %v1018, 128
        %1025 = vxpose.xlu0.b32.cont [5/16] 0.0, 128
        %1026 = vxpose.xlu0.b32.cont [6/16] 0.0, 128
        %1027 = vxpose.xlu0.b32.cont [7/16] 0.0, 128
        %1028 = vxpose.xlu0.b32.cont [8/16] 0.0, 128
        %1029 = vxpose.xlu0.b32.cont [9/16] 0.0, 128
        %1030 = vxpose.xlu0.b32.cont [10/16] 0.0, 128
        %1031 = vxpose.xlu0.b32.cont [11/16] 0.0, 128
        %1032 = vxpose.xlu0.b32.cont [12/16] 0.0, 128
        %1033 = vxpose.xlu0.b32.cont [13/16] 0.0, 128
        %1034 = vxpose.xlu0.b32.cont [14/16] 0.0, 128
        %1035 = vxpose.xlu0.b32.cont [15/16] 0.0, 128
        %1036 = vxpose.xlu0.b32.end [16/16] 0.0, 128
        %v1037 = vpop.trf.xlu0
        %v1038 = vpop.trf.xlu0
        %v1039 = vpop.trf.xlu0
        %v1040 = vpop.trf.xlu0
        %v1041 = vpop.trf.xlu0
        %v1042 = vpop.trf.xlu0
        %v1043 = vpop.trf.xlu0
        %v1044 = vpop.trf.xlu0
        %v1045 = vpop.trf.xlu0
        %v1046 = vpop.trf.xlu0
        %v1047 = vpop.trf.xlu0
        %v1048 = vpop.trf.xlu0
        %v1049 = vpop.trf.xlu0
        %v1050 = vpop.trf.xlu0
        %v1051 = vpop.trf.xlu0
        %v1052 = vpop.trf.xlu0
        %vm1053 = vcmask 261120
        %v1055 = vsel %vm1053, %v1037, 0
        %v1058 = vsel %vm1053, %v1038, 0
        %v1061 = vsel %vm1053, %v1039, 0
        %v1064 = vsel %vm1053, %v1040, 0
        %1066 = vmatprep.subr.mxu0 %v869
        %1067 = vmatpush1.msra.mxu0 %v868
        %1068 = vmatprep.subr.mxu0 %v871
        %1069 = vmatpush1.msra.mxu0 %v870
        %1070 = vmatprep.subr.mxu0 %v873
        %1071 = vmatpush1.msra.mxu0 %v872
        %1072 = vmatprep.subr.mxu0 %v875
        %1073 = vmatpush1.msra.mxu0 %v874
        %1074 = vmatprep.subr.mxu0 0.0
        %1075 = vmatpush1.msra.mxu0 0.0
        %1076 = vmatprep.subr.mxu0 0.0
        %1077 = vmatpush1.msra.mxu0 0.0
        %1078 = vmatprep.subr.mxu0 0.0
        %1079 = vmatpush1.msra.mxu0 0.0
        %1080 = vmatprep.subr.mxu0 0.0
        %1081 = vmatpush1.msra.mxu0 0.0
        %1082 = vmatprep.subr.mxu0 0.0
        %1083 = vmatpush1.msra.mxu0 0.0
        %1084 = vmatprep.subr.mxu0 0.0
        %1085 = vmatpush1.msra.mxu0 0.0
        %1086 = vmatprep.subr.mxu0 0.0
        %1087 = vmatpush1.msra.mxu0 0.0
        %1088 = vmatprep.subr.mxu0 0.0
        %1089 = vmatpush1.msra.mxu0 0.0
        %1090 = vmatprep.subr.mxu0 0.0
        %1091 = vmatpush1.msra.mxu0 0.0
        %1092 = vmatprep.subr.mxu0 0.0
        %1093 = vmatpush1.msra.mxu0 0.0
        %1094 = vmatprep.subr.mxu0 0.0
        %1095 = vmatpush1.msra.mxu0 0.0
        %1096 = vmatprep.subr.mxu0 0.0
        %1097 = vmatpush1.msra.mxu0 0.0
        %1098 = vmatprep.subr.mxu0 0.0
        %1099 = vmatpush1.msra.mxu0 0.0
        %1100 = vmatprep.subr.mxu0 0.0
        %1101 = vmatpush1.msra.mxu0 0.0
        %1102 = vmatprep.subr.mxu0 0.0
        %1103 = vmatpush1.msra.mxu0 0.0
        %1104 = vmatprep.subr.mxu0 0.0
        %1105 = vmatpush1.msra.mxu0 0.0
        %1106 = vmatprep.subr.mxu0 0.0
        %1107 = vmatpush1.msra.mxu0 0.0
        %1108 = vmatprep.subr.mxu0 0.0
        %1109 = vmatpush1.msra.mxu0 0.0
        %1110 = vmatprep.subr.mxu0 0.0
        %1111 = vmatpush1.msra.mxu0 0.0
        %1112 = vmatprep.subr.mxu0 0.0
        %1113 = vmatpush1.msra.mxu0 0.0
        %1114 = vmatprep.subr.mxu0 0.0
        %1115 = vmatpush1.msra.mxu0 0.0
        %1116 = vmatprep.subr.mxu0 0.0
        %1117 = vmatpush1.msra.mxu0 0.0
        %1118 = vmatprep.subr.mxu0 0.0
        %1119 = vmatpush1.msra.mxu0 0.0
        %1120 = vmatprep.subr.mxu0 0.0
        %1121 = vmatpush1.msra.mxu0 0.0
        %1122 = vmatprep.subr.mxu0 0.0
        %1123 = vmatpush1.msra.mxu0 0.0
        %1124 = vmatprep.subr.mxu0 0.0
        %1125 = vmatpush1.msra.mxu0 0.0
        %1126 = vmatprep.subr.mxu0 0.0
        %1127 = vmatpush1.msra.mxu0 0.0
        %1128 = vmatprep.subr.mxu0 0.0
        %1129 = vmatpush1.msra.mxu0 0.0
        %1130 = vmatprep.mubr.f32.mxu0 0.0
        %1131 = vmatmul.mubr.f32.gmra.mrb[0].mxu0 %v1055
        %v1132 = vpop.f32.mrb[0].mxu0
        %v1133 = vadd.f32 0.0, %v1132
        %v1134 = vpop.f32.mrb[0].mxu0
        %v1135 = vadd.f32 0.0, %v1134
        %1136 = vmatprep.mubr.f32.mxu0 0.0
        %1137 = vmatmul.mubr.f32.gmra.mrb[0].mxu0 %v1058
        %v1138 = vpop.f32.mrb[0].mxu0
        %v1139 = vadd.f32 0.0, %v1138
        %v1140 = vpop.f32.mrb[0].mxu0
        %v1141 = vadd.f32 0.0, %v1140
        %1142 = vmatprep.mubr.f32.mxu0 0.0
        %1143 = vmatmul.mubr.f32.gmra.mrb[0].mxu0 %v1061
        %v1144 = vpop.f32.mrb[0].mxu0
        %v1145 = vadd.f32 0.0, %v1144
        %v1146 = vpop.f32.mrb[0].mxu0
        %v1147 = vadd.f32 0.0, %v1146
        %1148 = vmatprep.mubr.f32.mxu0 0.0
        %1149 = vmatmul.mubr.f32.gmra.mrb[0].mxu0 %v1064
        %v1150 = vpop.f32.mrb[0].mxu0
        %v1151 = vadd.f32 0.0, %v1150
        %v1152 = vpop.f32.mrb[0].mxu0
        %v1153 = vadd.f32 0.0, %v1152
        %1154 = vdwg.mxu0
        %v1155 = vmax.f32 %v536, %v548
        %v1156 = vmax.f32 %v542, %v554
        %v1157 = vmax.f32 %v1155, %v1156
        %v1158 = vrot.slane %v1157, 4
        %v1159 = vmax.f32 %v1157, %v1158
        %v1160 = vrot.slane %v1159, 2
        %v1161 = vmax.f32 %v1159, %v1160
        %v1162 = vrot.slane %v1161, 1
        %v1163 = vmax.f32 %v1161, %v1162
        %v1164 = vmax.f32 %v538, %v550
        %v1165 = vmax.f32 %v544, %v556
        %v1166 = vmax.f32 %v1164, %v1165
        %v1167 = vrot.slane %v1166, 4
        %v1168 = vmax.f32 %v1166, %v1167
        %v1169 = vrot.slane %v1168, 2
        %v1170 = vmax.f32 %v1168, %v1169
        %v1171 = vrot.slane %v1170, 1
        %v1172 = vmax.f32 %v1170, %v1171
        %v1173 = vsub.f32 %v536, %v1163
        %v1174 = vsub.f32 %v538, %v1172
        %v1175 = vsub.f32 %v542, %v1163
        %v1176 = vsub.f32 %v544, %v1172
        %v1177 = vsub.f32 %v548, %v1163
        %v1178 = vsub.f32 %v550, %v1172
        %v1179 = vsub.f32 %v554, %v1163
        %v1180 = vsub.f32 %v556, %v1172
        %v1181 = vmul.f32 %v1173, 1.442695
        %v1182 = vpow.pop %v1181
        %v1183 = vmul.f32 %v1174, 1.442695
        %v1184 = vpow.pop %v1183
        %v1185 = vmul.f32 %v1175, 1.442695
        %v1186 = vpow.pop %v1185
        %v1187 = vmul.f32 %v1176, 1.442695
        %v1188 = vpow.pop %v1187
        %v1189 = vmul.f32 %v1177, 1.442695
        %v1190 = vpow.pop %v1189
        %v1191 = vmul.f32 %v1178, 1.442695
        %v1192 = vpow.pop %v1191
        %v1193 = vmul.f32 %v1179, 1.442695
        %v1194 = vpow.pop %v1193
        %v1195 = vmul.f32 %v1180, 1.442695
        %v1196 = vpow.pop %v1195
        %v1197 = vadd.f32 %v1182, %v1186
        %v1198 = vadd.f32 %v1197, %v1190
        %v1199 = vadd.f32 %v1198, %v1194
        %v1200 = vrot.slane %v1199, 4
        %v1201 = vadd.f32 %v1199, %v1200
        %v1202 = vrot.slane %v1201, 2
        %v1203 = vadd.f32 %v1201, %v1202
        %v1204 = vrot.slane %v1203, 1
        %v1205 = vadd.f32 %v1203, %v1204
        %v1206 = vadd.f32 %v1184, %v1188
        %v1207 = vadd.f32 %v1206, %v1192
        %v1208 = vadd.f32 %v1207, %v1196
        %v1209 = vrot.slane %v1208, 4
        %v1210 = vadd.f32 %v1208, %v1209
        %v1211 = vrot.slane %v1210, 2
        %v1212 = vadd.f32 %v1210, %v1211
        %v1213 = vrot.slane %v1212, 1
        %v1214 = vadd.f32 %v1212, %v1213
        %v1215 = vrcp.pop %v1205
        %v1216 = vmul.f32 %v1182, %v1215
        %v1217 = vrcp.pop %v1214
        %v1218 = vmul.f32 %v1184, %v1217
        %v1219 = vmul.f32 %v1186, %v1215
        %v1220 = vmul.f32 %v1188, %v1217
        %v1221 = vmul.f32 %v1190, %v1215
        %v1222 = vmul.f32 %v1192, %v1217
        %v1223 = vmul.f32 %v1194, %v1215
        %v1224 = vmul.f32 %v1196, %v1217
        %v1225 = vmul.f32 %v1216, 0.17677669
        %v1226 = vmul.f32 %v1218, 0.17677669
        %v1227 = vmul.f32 %v1219, 0.17677669
        %v1228 = vmul.f32 %v1220, 0.17677669
        %v1229 = vmul.f32 %v1221, 0.17677669
        %v1230 = vmul.f32 %v1222, 0.17677669
        %v1231 = vmul.f32 %v1223, 0.17677669
        %v1232 = vmul.f32 %v1224, 0.17677669
        %v1233 = vmax.f32 %v632, %v634
        %1234 = vmax.xlane.f32.xlu0 %v1233
        %v1235 = vpop.xlane.xlu0 %1234
        %v1236 = vmax.f32 %v638, %v640
        %1237 = vmax.xlane.f32.xlu0 %v1236
        %v1238 = vpop.xlane.xlu0 %1237
        %v1239 = vmax.f32 %v644, %v646
        %1240 = vmax.xlane.f32.xlu0 %v1239
        %v1241 = vpop.xlane.xlu0 %1240
        %v1242 = vmax.f32 %v650, %v652
        %1243 = vmax.xlane.f32.xlu0 %v1242
        %v1244 = vpop.xlane.xlu0 %1243
        %v1245 = vsub.f32 %v632, %v1235
        %v1246 = vsub.f32 %v634, %v1235
        %v1247 = vsub.f32 %v638, %v1238
        %v1248 = vsub.f32 %v640, %v1238
        %v1249 = vsub.f32 %v644, %v1241
        %v1250 = vsub.f32 %v646, %v1241
        %v1251 = vsub.f32 %v650, %v1244
        %v1252 = vsub.f32 %v652, %v1244
        %v1253 = vmul.f32 %v1245, 1.442695
        %v1254 = vpow.pop %v1253
        %v1255 = vmul.f32 %v1246, 1.442695
        %v1256 = vpow.pop %v1255
        %v1257 = vmul.f32 %v1247, 1.442695
        %v1258 = vpow.pop %v1257
        %v1259 = vmul.f32 %v1248, 1.442695
        %v1260 = vpow.pop %v1259
        %v1261 = vmul.f32 %v1249, 1.442695
        %v1262 = vpow.pop %v1261
        %v1263 = vmul.f32 %v1250, 1.442695
        %v1264 = vpow.pop %v1263
        %v1265 = vmul.f32 %v1251, 1.442695
        %v1266 = vpow.pop %v1265
        %v1267 = vmul.f32 %v1252, 1.442695
        %v1268 = vpow.pop %v1267
        %v1269 = vadd.f32 %v1254, %v1256
        %1270 = vadd.xlane.f32.xlu0 %v1269
        %v1271 = vpop.xlane.xlu0 %1270
        %v1272 = vadd.f32 %v1258, %v1260
        %1273 = vadd.xlane.f32.xlu0 %v1272
        %v1274 = vpop.xlane.xlu0 %1273
        %v1275 = vadd.f32 %v1262, %v1264
        %1276 = vadd.xlane.f32.xlu0 %v1275
        %v1277 = vpop.xlane.xlu0 %1276
        %v1278 = vadd.f32 %v1266, %v1268
        %1279 = vadd.xlane.f32.xlu0 %v1278
        %v1280 = vpop.xlane.xlu0 %1279
        %v1281 = vrcp.pop %v1271
        %v1282 = vmul.f32 %v1254, %v1281
        %v1283 = vmul.f32 %v1256, %v1281
        %v1284 = vrcp.pop %v1274
        %v1285 = vmul.f32 %v1258, %v1284
        %v1286 = vmul.f32 %v1260, %v1284
        %v1287 = vrcp.pop %v1277
        %v1288 = vmul.f32 %v1262, %v1287
        %v1289 = vmul.f32 %v1264, %v1287
        %v1290 = vrcp.pop %v1280
        %v1291 = vmul.f32 %v1266, %v1290
        %v1292 = vmul.f32 %v1268, %v1290
        %1293 = vmatprep.subr.mxu0 %v730
        %1294 = vmatpush1.xpose.msra.mxu0 %v728
        %1295 = vmatprep.subr.mxu0 %v736
        %1296 = vmatpush1.xpose.msra.mxu0 %v734
        %1297 = vmatprep.subr.mxu0 %v742
        %1298 = vmatpush1.xpose.msra.mxu0 %v740
        %1299 = vmatprep.subr.mxu0 %v748
        %1300 = vmatpush1.xpose.msra.mxu0 %v746
        %1301 = vmatprep.subr.mxu0 0.0
        %1302 = vmatpush1.xpose.msra.mxu0 0.0
        %1303 = vmatprep.subr.mxu0 0.0
        %1304 = vmatpush1.xpose.msra.mxu0 0.0
        %1305 = vmatprep.subr.mxu0 0.0
        %1306 = vmatpush1.xpose.msra.mxu0 0.0
        %1307 = vmatprep.subr.mxu0 0.0
        %1308 = vmatpush1.xpose.msra.mxu0 0.0
        %1309 = vmatprep.subr.mxu0 0.0
        %1310 = vmatpush1.xpose.msra.mxu0 0.0
        %1311 = vmatprep.subr.mxu0 0.0
        %1312 = vmatpush1.xpose.msra.mxu0 0.0
        %1313 = vmatprep.subr.mxu0 0.0
        %1314 = vmatpush1.xpose.msra.mxu0 0.0
        %1315 = vmatprep.subr.mxu0 0.0
        %1316 = vmatpush1.xpose.msra.mxu0 0.0
        %1317 = vmatprep.subr.mxu0 0.0
        %1318 = vmatpush1.xpose.msra.mxu0 0.0
        %1319 = vmatprep.subr.mxu0 0.0
        %1320 = vmatpush1.xpose.msra.mxu0 0.0
        %1321 = vmatprep.subr.mxu0 0.0
        %1322 = vmatpush1.xpose.msra.mxu0 0.0
        %1323 = vmatprep.subr.mxu0 0.0
        %1324 = vmatpush1.xpose.msra.mxu0 0.0
        %1325 = vmatprep.subr.mxu0 0.0
        %1326 = vmatpush1.xpose.msra.mxu0 0.0
        %1327 = vmatprep.subr.mxu0 0.0
        %1328 = vmatpush1.xpose.msra.mxu0 0.0
        %1329 = vmatprep.subr.mxu0 0.0
        %1330 = vmatpush1.xpose.msra.mxu0 0.0
        %1331 = vmatprep.subr.mxu0 0.0
        %1332 = vmatpush1.xpose.msra.mxu0 0.0
        %1333 = vmatprep.subr.mxu0 0.0
        %1334 = vmatpush1.xpose.msra.mxu0 0.0
        %1335 = vmatprep.subr.mxu0 0.0
        %1336 = vmatpush1.xpose.msra.mxu0 0.0
        %1337 = vmatprep.subr.mxu0 0.0
        %1338 = vmatpush1.xpose.msra.mxu0 0.0
        %1339 = vmatprep.subr.mxu0 0.0
        %1340 = vmatpush1.xpose.msra.mxu0 0.0
        %1341 = vmatprep.subr.mxu0 0.0
        %1342 = vmatpush1.xpose.msra.mxu0 0.0
        %1343 = vmatprep.subr.mxu0 0.0
        %1344 = vmatpush1.xpose.msra.mxu0 0.0
        %1345 = vmatprep.subr.mxu0 0.0
        %1346 = vmatpush1.xpose.msra.mxu0 0.0
        %1347 = vmatprep.subr.mxu0 0.0
        %1348 = vmatpush1.xpose.msra.mxu0 0.0
        %1349 = vmatprep.subr.mxu0 0.0
        %1350 = vmatpush1.xpose.msra.mxu0 0.0
        %1351 = vmatprep.subr.mxu0 0.0
        %1352 = vmatpush1.xpose.msra.mxu0 0.0
        %1353 = vmatprep.subr.mxu0 0.0
        %1354 = vmatpush1.xpose.msra.mxu0 0.0
        %1355 = vmatprep.subr.mxu0 0.0
        %1356 = vmatpush1.xpose.msra.mxu0 0.0
        %1357 = vmatprep.mubr.f32.mxu0 %v1283
        %1358 = vmatmul.mubr.f32.gmra.mrb[0].mxu0 %v1282
        %v1359 = vpop.f32.mrb[0].mxu0
        %v1360 = vadd.f32 0.0, %v1359
        %v1361 = vpop.f32.mrb[0].mxu0
        %1362 = vmatprep.mubr.f32.mxu0 %v1286
        %1363 = vmatmul.mubr.f32.gmra.mrb[0].mxu0 %v1285
        %v1364 = vpop.f32.mrb[0].mxu0
        %v1365 = vadd.f32 0.0, %v1364
        %v1366 = vpop.f32.mrb[0].mxu0
        %1367 = vmatprep.mubr.f32.mxu0 %v1289
        %1368 = vmatmul.mubr.f32.gmra.mrb[0].mxu0 %v1288
        %v1369 = vpop.f32.mrb[0].mxu0
        %v1370 = vadd.f32 0.0, %v1369
        %v1371 = vpop.f32.mrb[0].mxu0
        %1372 = vmatprep.mubr.f32.mxu0 %v1292
        %1373 = vmatmul.mubr.f32.gmra.mrb[0].mxu0 %v1291
        %v1374 = vpop.f32.mrb[0].mxu0
        %v1375 = vadd.f32 0.0, %v1374
        %v1376 = vpop.f32.mrb[0].mxu0
        %1377 = vdwg.mxu0
        %1378 = vxpose.xlu0.b32.start [1/16] %v1360, 128
        %1379 = vxpose.xlu0.b32.cont [2/16] %v1365, 128
        %1380 = vxpose.xlu0.b32.cont [3/16] %v1370, 128
        %1381 = vxpose.xlu0.b32.cont [4/16] %v1375, 128
        %1382 = vxpose.xlu0.b32.cont [5/16] 0.0, 128
        %1383 = vxpose.xlu0.b32.cont [6/16] 0.0, 128
        %1384 = vxpose.xlu0.b32.cont [7/16] 0.0, 128
        %1385 = vxpose.xlu0.b32.cont [8/16] 0.0, 128
        %1386 = vxpose.xlu0.b32.cont [9/16] 0.0, 128
        %1387 = vxpose.xlu0.b32.cont [10/16] 0.0, 128
        %1388 = vxpose.xlu0.b32.cont [11/16] 0.0, 128
        %1389 = vxpose.xlu0.b32.cont [12/16] 0.0, 128
        %1390 = vxpose.xlu0.b32.cont [13/16] 0.0, 128
        %1391 = vxpose.xlu0.b32.cont [14/16] 0.0, 128
        %1392 = vxpose.xlu0.b32.cont [15/16] 0.0, 128
        %1393 = vxpose.xlu0.b32.end [16/16] 0.0, 128
        %v1394 = vpop.trf.xlu0
        %v1395 = vpop.trf.xlu0
        %v1396 = vpop.trf.xlu0
        %v1397 = vpop.trf.xlu0
        %v1398 = vpop.trf.xlu0
        %v1399 = vpop.trf.xlu0
        %v1400 = vpop.trf.xlu0
        %v1401 = vpop.trf.xlu0
        %v1402 = vpop.trf.xlu0
        %v1403 = vpop.trf.xlu0
        %v1404 = vpop.trf.xlu0
        %v1405 = vpop.trf.xlu0
        %v1406 = vpop.trf.xlu0
        %v1407 = vpop.trf.xlu0
        %v1408 = vpop.trf.xlu0
        %v1409 = vpop.trf.xlu0
        %v1411 = vsel %vm1053, %v1394, 0
        %v1414 = vsel %vm1053, %v1395, 0
        %v1417 = vsel %vm1053, %v1396, 0
        %v1420 = vsel %vm1053, %v1397, 0
        %1422 = vmatprep.subr.mxu0 %v1226
        %1423 = vmatpush1.msra.mxu0 %v1225
        %1424 = vmatprep.subr.mxu0 %v1228
        %1425 = vmatpush1.msra.mxu0 %v1227
        %1426 = vmatprep.subr.mxu0 %v1230
        %1427 = vmatpush1.msra.mxu0 %v1229
        %1428 = vmatprep.subr.mxu0 %v1232
        %1429 = vmatpush1.msra.mxu0 %v1231
        %1430 = vmatprep.subr.mxu0 0.0
        %1431 = vmatpush1.msra.mxu0 0.0
        %1432 = vmatprep.subr.mxu0 0.0
        %1433 = vmatpush1.msra.mxu0 0.0
        %1434 = vmatprep.subr.mxu0 0.0
        %1435 = vmatpush1.msra.mxu0 0.0
        %1436 = vmatprep.subr.mxu0 0.0
        %1437 = vmatpush1.msra.mxu0 0.0
        %1438 = vmatprep.subr.mxu0 0.0
        %1439 = vmatpush1.msra.mxu0 0.0
        %1440 = vmatprep.subr.mxu0 0.0
        %1441 = vmatpush1.msra.mxu0 0.0
        %1442 = vmatprep.subr.mxu0 0.0
        %1443 = vmatpush1.msra.mxu0 0.0
        %1444 = vmatprep.subr.mxu0 0.0
        %1445 = vmatpush1.msra.mxu0 0.0
        %1446 = vmatprep.subr.mxu0 0.0
        %1447 = vmatpush1.msra.mxu0 0.0
        %1448 = vmatprep.subr.mxu0 0.0
        %1449 = vmatpush1.msra.mxu0 0.0
        %1450 = vmatprep.subr.mxu0 0.0
        %1451 = vmatpush1.msra.mxu0 0.0
        %1452 = vmatprep.subr.mxu0 0.0
        %1453 = vmatpush1.msra.mxu0 0.0
        %1454 = vmatprep.subr.mxu0 0.0
        %1455 = vmatpush1.msra.mxu0 0.0
        %1456 = vmatprep.subr.mxu0 0.0
        %1457 = vmatpush1.msra.mxu0 0.0
        %1458 = vmatprep.subr.mxu0 0.0
        %1459 = vmatpush1.msra.mxu0 0.0
        %1460 = vmatprep.subr.mxu0 0.0
        %1461 = vmatpush1.msra.mxu0 0.0
        %1462 = vmatprep.subr.mxu0 0.0
        %1463 = vmatpush1.msra.mxu0 0.0
        %1464 = vmatprep.subr.mxu0 0.0
        %1465 = vmatpush1.msra.mxu0 0.0
        %1466 = vmatprep.subr.mxu0 0.0
        %1467 = vmatpush1.msra.mxu0 0.0
        %1468 = vmatprep.subr.mxu0 0.0
        %1469 = vmatpush1.msra.mxu0 0.0
        %1470 = vmatprep.subr.mxu0 0.0
        %1471 = vmatpush1.msra.mxu0 0.0
        %1472 = vmatprep.subr.mxu0 0.0
        %1473 = vmatpush1.msra.mxu0 0.0
        %1474 = vmatprep.subr.mxu0 0.0
        %1475 = vmatpush1.msra.mxu0 0.0
        %1476 = vmatprep.subr.mxu0 0.0
        %1477 = vmatpush1.msra.mxu0 0.0
        %1478 = vmatprep.subr.mxu0 0.0
        %1479 = vmatpush1.msra.mxu0 0.0
        %1480 = vmatprep.subr.mxu0 0.0
        %1481 = vmatpush1.msra.mxu0 0.0
        %1482 = vmatprep.subr.mxu0 0.0
        %1483 = vmatpush1.msra.mxu0 0.0
        %1484 = vmatprep.subr.mxu0 0.0
        %1485 = vmatpush1.msra.mxu0 0.0
        %1486 = vmatprep.mubr.f32.mxu0 0.0
        %1487 = vmatmul.mubr.f32.gmra.mrb[0].mxu0 %v1411
        %v1488 = vpop.f32.mrb[0].mxu0
        %v1489 = vadd.f32 0.0, %v1488
        %v1490 = vpop.f32.mrb[0].mxu0
        %v1491 = vadd.f32 0.0, %v1490
        %1492 = vmatprep.mubr.f32.mxu0 0.0
        %1493 = vmatmul.mubr.f32.gmra.mrb[0].mxu0 %v1414
        %v1494 = vpop.f32.mrb[0].mxu0
        %v1495 = vadd.f32 0.0, %v1494
        %v1496 = vpop.f32.mrb[0].mxu0
        %v1497 = vadd.f32 0.0, %v1496
        %1498 = vmatprep.mubr.f32.mxu0 0.0
        %1499 = vmatmul.mubr.f32.gmra.mrb[0].mxu0 %v1417
        %v1500 = vpop.f32.mrb[0].mxu0
        %v1501 = vadd.f32 0.0, %v1500
        %v1502 = vpop.f32.mrb[0].mxu0
        %v1503 = vadd.f32 0.0, %v1502
        %1504 = vmatprep.mubr.f32.mxu0 0.0
        %1505 = vmatmul.mubr.f32.gmra.mrb[0].mxu0 %v1420
        %v1506 = vpop.f32.mrb[0].mxu0
        %v1507 = vadd.f32 0.0, %v1506
        %v1508 = vpop.f32.mrb[0].mxu0
        %v1509 = vadd.f32 0.0, %v1508
        %1510 = vdwg.mxu0
        %v1511 = vmax.f32 %v560, %v572
        %v1512 = vmax.f32 %v566, %v578
        %v1513 = vmax.f32 %v1511, %v1512
        %v1514 = vrot.slane %v1513, 4
        %v1515 = vmax.f32 %v1513, %v1514
        %v1516 = vrot.slane %v1515, 2
        %v1517 = vmax.f32 %v1515, %v1516
        %v1518 = vrot.slane %v1517, 1
        %v1519 = vmax.f32 %v1517, %v1518
        %v1520 = vmax.f32 %v562, %v574
        %v1521 = vmax.f32 %v568, %v580
        %v1522 = vmax.f32 %v1520, %v1521
        %v1523 = vrot.slane %v1522, 4
        %v1524 = vmax.f32 %v1522, %v1523
        %v1525 = vrot.slane %v1524, 2
        %v1526 = vmax.f32 %v1524, %v1525
        %v1527 = vrot.slane %v1526, 1
        %v1528 = vmax.f32 %v1526, %v1527
        %v1529 = vsub.f32 %v560, %v1519
        %v1530 = vsub.f32 %v562, %v1528
        %v1531 = vsub.f32 %v566, %v1519
        %v1532 = vsub.f32 %v568, %v1528
        %v1533 = vsub.f32 %v572, %v1519
        %v1534 = vsub.f32 %v574, %v1528
        %v1535 = vsub.f32 %v578, %v1519
        %v1536 = vsub.f32 %v580, %v1528
        %v1537 = vmul.f32 %v1529, 1.442695
        %v1538 = vpow.pop %v1537
        %v1539 = vmul.f32 %v1530, 1.442695
        %v1540 = vpow.pop %v1539
        %v1541 = vmul.f32 %v1531, 1.442695
        %v1542 = vpow.pop %v1541
        %v1543 = vmul.f32 %v1532, 1.442695
        %v1544 = vpow.pop %v1543
        %v1545 = vmul.f32 %v1533, 1.442695
        %v1546 = vpow.pop %v1545
        %v1547 = vmul.f32 %v1534, 1.442695
        %v1548 = vpow.pop %v1547
        %v1549 = vmul.f32 %v1535, 1.442695
        %v1550 = vpow.pop %v1549
        %v1551 = vmul.f32 %v1536, 1.442695
        %v1552 = vpow.pop %v1551
        %v1553 = vadd.f32 %v1538, %v1542
        %v1554 = vadd.f32 %v1553, %v1546
        %v1555 = vadd.f32 %v1554, %v1550
        %v1556 = vrot.slane %v1555, 4
        %v1557 = vadd.f32 %v1555, %v1556
        %v1558 = vrot.slane %v1557, 2
        %v1559 = vadd.f32 %v1557, %v1558
        %v1560 = vrot.slane %v1559, 1
        %v1561 = vadd.f32 %v1559, %v1560
        %v1562 = vadd.f32 %v1540, %v1544
        %v1563 = vadd.f32 %v1562, %v1548
        %v1564 = vadd.f32 %v1563, %v1552
        %v1565 = vrot.slane %v1564, 4
        %v1566 = vadd.f32 %v1564, %v1565
        %v1567 = vrot.slane %v1566, 2
        %v1568 = vadd.f32 %v1566, %v1567
        %v1569 = vrot.slane %v1568, 1
        %v1570 = vadd.f32 %v1568, %v1569
        %v1571 = vrcp.pop %v1561
        %v1572 = vmul.f32 %v1538, %v1571
        %v1573 = vrcp.pop %v1570
        %v1574 = vmul.f32 %v1540, %v1573
        %v1575 = vmul.f32 %v1542, %v1571
        %v1576 = vmul.f32 %v1544, %v1573
        %v1577 = vmul.f32 %v1546, %v1571
        %v1578 = vmul.f32 %v1548, %v1573
        %v1579 = vmul.f32 %v1550, %v1571
        %v1580 = vmul.f32 %v1552, %v1573
        %v1581 = vmul.f32 %v1572, 0.17677669
        %v1582 = vmul.f32 %v1574, 0.17677669
        %v1583 = vmul.f32 %v1575, 0.17677669
        %v1584 = vmul.f32 %v1576, 0.17677669
        %v1585 = vmul.f32 %v1577, 0.17677669
        %v1586 = vmul.f32 %v1578, 0.17677669
        %v1587 = vmul.f32 %v1579, 0.17677669
        %v1588 = vmul.f32 %v1580, 0.17677669
        %v1589 = vmax.f32 %v656, %v658
        %1590 = vmax.xlane.f32.xlu0 %v1589
        %v1591 = vpop.xlane.xlu0 %1590
        %v1592 = vmax.f32 %v662, %v664
        %1593 = vmax.xlane.f32.xlu0 %v1592
        %v1594 = vpop.xlane.xlu0 %1593
        %v1595 = vmax.f32 %v668, %v670
        %1596 = vmax.xlane.f32.xlu0 %v1595
        %v1597 = vpop.xlane.xlu0 %1596
        %v1598 = vmax.f32 %v674, %v676
        %1599 = vmax.xlane.f32.xlu0 %v1598
        %v1600 = vpop.xlane.xlu0 %1599
        %v1601 = vsub.f32 %v656, %v1591
        %v1602 = vsub.f32 %v658, %v1591
        %v1603 = vsub.f32 %v662, %v1594
        %v1604 = vsub.f32 %v664, %v1594
        %v1605 = vsub.f32 %v668, %v1597
        %v1606 = vsub.f32 %v670, %v1597
        %v1607 = vsub.f32 %v674, %v1600
        %v1608 = vsub.f32 %v676, %v1600
        %v1609 = vmul.f32 %v1601, 1.442695
        %v1610 = vpow.pop %v1609
        %v1611 = vmul.f32 %v1602, 1.442695
        %v1612 = vpow.pop %v1611
        %v1613 = vmul.f32 %v1603, 1.442695
        %v1614 = vpow.pop %v1613
        %v1615 = vmul.f32 %v1604, 1.442695
        %v1616 = vpow.pop %v1615
        %v1617 = vmul.f32 %v1605, 1.442695
        %v1618 = vpow.pop %v1617
        %v1619 = vmul.f32 %v1606, 1.442695
        %v1620 = vpow.pop %v1619
        %v1621 = vmul.f32 %v1607, 1.442695
        %v1622 = vpow.pop %v1621
        %v1623 = vmul.f32 %v1608, 1.442695
        %v1624 = vpow.pop %v1623
        %v1625 = vadd.f32 %v1610, %v1612
        %1626 = vadd.xlane.f32.xlu0 %v1625
        %v1627 = vpop.xlane.xlu0 %1626
        %v1628 = vadd.f32 %v1614, %v1616
        %1629 = vadd.xlane.f32.xlu0 %v1628
        %v1630 = vpop.xlane.xlu0 %1629
        %v1631 = vadd.f32 %v1618, %v1620
        %1632 = vadd.xlane.f32.xlu0 %v1631
        %v1633 = vpop.xlane.xlu0 %1632
        %v1634 = vadd.f32 %v1622, %v1624
        %1635 = vadd.xlane.f32.xlu0 %v1634
        %v1636 = vpop.xlane.xlu0 %1635
        %v1637 = vrcp.pop %v1627
        %v1638 = vmul.f32 %v1610, %v1637
        %v1639 = vmul.f32 %v1612, %v1637
        %v1640 = vrcp.pop %v1630
        %v1641 = vmul.f32 %v1614, %v1640
        %v1642 = vmul.f32 %v1616, %v1640
        %v1643 = vrcp.pop %v1633
        %v1644 = vmul.f32 %v1618, %v1643
        %v1645 = vmul.f32 %v1620, %v1643
        %v1646 = vrcp.pop %v1636
        %v1647 = vmul.f32 %v1622, %v1646
        %v1648 = vmul.f32 %v1624, %v1646
        %1649 = vmatprep.subr.mxu0 %v754
        %1650 = vmatpush1.xpose.msra.mxu0 %v752
        %1651 = vmatprep.subr.mxu0 %v760
        %1652 = vmatpush1.xpose.msra.mxu0 %v758
        %1653 = vmatprep.subr.mxu0 %v766
        %1654 = vmatpush1.xpose.msra.mxu0 %v764
        %1655 = vmatprep.subr.mxu0 %v772
        %1656 = vmatpush1.xpose.msra.mxu0 %v770
        %1657 = vmatprep.subr.mxu0 0.0
        %1658 = vmatpush1.xpose.msra.mxu0 0.0
        %1659 = vmatprep.subr.mxu0 0.0
        %1660 = vmatpush1.xpose.msra.mxu0 0.0
        %1661 = vmatprep.subr.mxu0 0.0
        %1662 = vmatpush1.xpose.msra.mxu0 0.0
        %1663 = vmatprep.subr.mxu0 0.0
        %1664 = vmatpush1.xpose.msra.mxu0 0.0
        %1665 = vmatprep.subr.mxu0 0.0
        %1666 = vmatpush1.xpose.msra.mxu0 0.0
        %1667 = vmatprep.subr.mxu0 0.0
        %1668 = vmatpush1.xpose.msra.mxu0 0.0
        %1669 = vmatprep.subr.mxu0 0.0
        %1670 = vmatpush1.xpose.msra.mxu0 0.0
        %1671 = vmatprep.subr.mxu0 0.0
        %1672 = vmatpush1.xpose.msra.mxu0 0.0
        %1673 = vmatprep.subr.mxu0 0.0
        %1674 = vmatpush1.xpose.msra.mxu0 0.0
        %1675 = vmatprep.subr.mxu0 0.0
        %1676 = vmatpush1.xpose.msra.mxu0 0.0
        %1677 = vmatprep.subr.mxu0 0.0
        %1678 = vmatpush1.xpose.msra.mxu0 0.0
        %1679 = vmatprep.subr.mxu0 0.0
        %1680 = vmatpush1.xpose.msra.mxu0 0.0
        %1681 = vmatprep.subr.mxu0 0.0
        %1682 = vmatpush1.xpose.msra.mxu0 0.0
        %1683 = vmatprep.subr.mxu0 0.0
        %1684 = vmatpush1.xpose.msra.mxu0 0.0
        %1685 = vmatprep.subr.mxu0 0.0
        %1686 = vmatpush1.xpose.msra.mxu0 0.0
        %1687 = vmatprep.subr.mxu0 0.0
        %1688 = vmatpush1.xpose.msra.mxu0 0.0
        %1689 = vmatprep.subr.mxu0 0.0
        %1690 = vmatpush1.xpose.msra.mxu0 0.0
        %1691 = vmatprep.subr.mxu0 0.0
        %1692 = vmatpush1.xpose.msra.mxu0 0.0
        %1693 = vmatprep.subr.mxu0 0.0
        %1694 = vmatpush1.xpose.msra.mxu0 0.0
        %1695 = vmatprep.subr.mxu0 0.0
        %1696 = vmatpush1.xpose.msra.mxu0 0.0
        %1697 = vmatprep.subr.mxu0 0.0
        %1698 = vmatpush1.xpose.msra.mxu0 0.0
        %1699 = vmatprep.subr.mxu0 0.0
        %1700 = vmatpush1.xpose.msra.mxu0 0.0
        %1701 = vmatprep.subr.mxu0 0.0
        %1702 = vmatpush1.xpose.msra.mxu0 0.0
        %1703 = vmatprep.subr.mxu0 0.0
        %1704 = vmatpush1.xpose.msra.mxu0 0.0
        %1705 = vmatprep.subr.mxu0 0.0
        %1706 = vmatpush1.xpose.msra.mxu0 0.0
        %1707 = vmatprep.subr.mxu0 0.0
        %1708 = vmatpush1.xpose.msra.mxu0 0.0
        %1709 = vmatprep.subr.mxu0 0.0
        %1710 = vmatpush1.xpose.msra.mxu0 0.0
        %1711 = vmatprep.subr.mxu0 0.0
        %1712 = vmatpush1.xpose.msra.mxu0 0.0
        %1713 = vmatprep.mubr.f32.mxu0 %v1639
        %1714 = vmatmul.mubr.f32.gmra.mrb[0].mxu0 %v1638
        %v1715 = vpop.f32.mrb[0].mxu0
        %v1716 = vadd.f32 0.0, %v1715
        %v1717 = vpop.f32.mrb[0].mxu0
        %1718 = vmatprep.mubr.f32.mxu0 %v1642
        %1719 = vmatmul.mubr.f32.gmra.mrb[0].mxu0 %v1641
        %v1720 = vpop.f32.mrb[0].mxu0
        %v1721 = vadd.f32 0.0, %v1720
        %v1722 = vpop.f32.mrb[0].mxu0
        %1723 = vmatprep.mubr.f32.mxu0 %v1645
        %1724 = vmatmul.mubr.f32.gmra.mrb[0].mxu0 %v1644
        %v1725 = vpop.f32.mrb[0].mxu0
        %v1726 = vadd.f32 0.0, %v1725
        %v1727 = vpop.f32.mrb[0].mxu0
        %1728 = vmatprep.mubr.f32.mxu0 %v1648
        %1729 = vmatmul.mubr.f32.gmra.mrb[0].mxu0 %v1647
        %v1730 = vpop.f32.mrb[0].mxu0
        %v1731 = vadd.f32 0.0, %v1730
        %v1732 = vpop.f32.mrb[0].mxu0
        %1733 = vdwg.mxu0
        %1734 = vxpose.xlu0.b32.start [1/16] %v1716, 128
        %1735 = vxpose.xlu0.b32.cont [2/16] %v1721, 128
        %1736 = vxpose.xlu0.b32.cont [3/16] %v1726, 128
        %1737 = vxpose.xlu0.b32.cont [4/16] %v1731, 128
        %1738 = vxpose.xlu0.b32.cont [5/16] 0.0, 128
        %1739 = vxpose.xlu0.b32.cont [6/16] 0.0, 128
        %1740 = vxpose.xlu0.b32.cont [7/16] 0.0, 128
        %1741 = vxpose.xlu0.b32.cont [8/16] 0.0, 128
        %1742 = vxpose.xlu0.b32.cont [9/16] 0.0, 128
        %1743 = vxpose.xlu0.b32.cont [10/16] 0.0, 128
        %1744 = vxpose.xlu0.b32.cont [11/16] 0.0, 128
        %1745 = vxpose.xlu0.b32.cont [12/16] 0.0, 128
        %1746 = vxpose.xlu0.b32.cont [13/16] 0.0, 128
        %1747 = vxpose.xlu0.b32.cont [14/16] 0.0, 128
        %1748 = vxpose.xlu0.b32.cont [15/16] 0.0, 128
        %1749 = vxpose.xlu0.b32.end [16/16] 0.0, 128
        %v1750 = vpop.trf.xlu0
        %v1751 = vpop.trf.xlu0
        %v1752 = vpop.trf.xlu0
        %v1753 = vpop.trf.xlu0
        %v1754 = vpop.trf.xlu0
        %v1755 = vpop.trf.xlu0
        %v1756 = vpop.trf.xlu0
        %v1757 = vpop.trf.xlu0
        %v1758 = vpop.trf.xlu0
        %v1759 = vpop.trf.xlu0
        %v1760 = vpop.trf.xlu0
        %v1761 = vpop.trf.xlu0
        %v1762 = vpop.trf.xlu0
        %v1763 = vpop.trf.xlu0
        %v1764 = vpop.trf.xlu0
        %v1765 = vpop.trf.xlu0
        %v1767 = vsel %vm1053, %v1750, 0
        %v1770 = vsel %vm1053, %v1751, 0
        %v1773 = vsel %vm1053, %v1752, 0
        %v1776 = vsel %vm1053, %v1753, 0
        %1778 = vmatprep.subr.mxu0 %v1582
        %1779 = vmatpush1.msra.mxu0 %v1581
        %1780 = vmatprep.subr.mxu0 %v1584
        %1781 = vmatpush1.msra.mxu0 %v1583
        %1782 = vmatprep.subr.mxu0 %v1586
        %1783 = vmatpush1.msra.mxu0 %v1585
        %1784 = vmatprep.subr.mxu0 %v1588
        %1785 = vmatpush1.msra.mxu0 %v1587
        %1786 = vmatprep.subr.mxu0 0.0
        %1787 = vmatpush1.msra.mxu0 0.0
        %1788 = vmatprep.subr.mxu0 0.0
        %1789 = vmatpush1.msra.mxu0 0.0
        %1790 = vmatprep.subr.mxu0 0.0
        %1791 = vmatpush1.msra.mxu0 0.0
        %1792 = vmatprep.subr.mxu0 0.0
        %1793 = vmatpush1.msra.mxu0 0.0
        %1794 = vmatprep.subr.mxu0 0.0
        %1795 = vmatpush1.msra.mxu0 0.0
        %1796 = vmatprep.subr.mxu0 0.0
        %1797 = vmatpush1.msra.mxu0 0.0
        %1798 = vmatprep.subr.mxu0 0.0
        %1799 = vmatpush1.msra.mxu0 0.0
        %1800 = vmatprep.subr.mxu0 0.0
        %1801 = vmatpush1.msra.mxu0 0.0
        %1802 = vmatprep.subr.mxu0 0.0
        %1803 = vmatpush1.msra.mxu0 0.0
        %1804 = vmatprep.subr.mxu0 0.0
        %1805 = vmatpush1.msra.mxu0 0.0
        %1806 = vmatprep.subr.mxu0 0.0
        %1807 = vmatpush1.msra.mxu0 0.0
        %1808 = vmatprep.subr.mxu0 0.0
        %1809 = vmatpush1.msra.mxu0 0.0
        %1810 = vmatprep.subr.mxu0 0.0
        %1811 = vmatpush1.msra.mxu0 0.0
        %1812 = vmatprep.subr.mxu0 0.0
        %1813 = vmatpush1.msra.mxu0 0.0
        %1814 = vmatprep.subr.mxu0 0.0
        %1815 = vmatpush1.msra.mxu0 0.0
        %1816 = vmatprep.subr.mxu0 0.0
        %1817 = vmatpush1.msra.mxu0 0.0
        %1818 = vmatprep.subr.mxu0 0.0
        %1819 = vmatpush1.msra.mxu0 0.0
        %1820 = vmatprep.subr.mxu0 0.0
        %1821 = vmatpush1.msra.mxu0 0.0
        %1822 = vmatprep.subr.mxu0 0.0
        %1823 = vmatpush1.msra.mxu0 0.0
        %1824 = vmatprep.subr.mxu0 0.0
        %1825 = vmatpush1.msra.mxu0 0.0
        %1826 = vmatprep.subr.mxu0 0.0
        %1827 = vmatpush1.msra.mxu0 0.0
        %1828 = vmatprep.subr.mxu0 0.0
        %1829 = vmatpush1.msra.mxu0 0.0
        %1830 = vmatprep.subr.mxu0 0.0
        %1831 = vmatpush1.msra.mxu0 0.0
        %1832 = vmatprep.subr.mxu0 0.0
        %1833 = vmatpush1.msra.mxu0 0.0
        %1834 = vmatprep.subr.mxu0 0.0
        %1835 = vmatpush1.msra.mxu0 0.0
        %1836 = vmatprep.subr.mxu0 0.0
        %1837 = vmatpush1.msra.mxu0 0.0
        %1838 = vmatprep.subr.mxu0 0.0
        %1839 = vmatpush1.msra.mxu0 0.0
        %1840 = vmatprep.subr.mxu0 0.0
        %1841 = vmatpush1.msra.mxu0 0.0
        %1842 = vmatprep.mubr.f32.mxu0 0.0
        %1843 = vmatmul.mubr.f32.gmra.mrb[0].mxu0 %v1767
        %v1844 = vpop.f32.mrb[0].mxu0
        %v1845 = vadd.f32 0.0, %v1844
        %v1846 = vpop.f32.mrb[0].mxu0
        %v1847 = vadd.f32 0.0, %v1846
        %1848 = vmatprep.mubr.f32.mxu0 0.0
        %1849 = vmatmul.mubr.f32.gmra.mrb[0].mxu0 %v1770
        %v1850 = vpop.f32.mrb[0].mxu0
        %v1851 = vadd.f32 0.0, %v1850
        %v1852 = vpop.f32.mrb[0].mxu0
        %v1853 = vadd.f32 0.0, %v1852
        %1854 = vmatprep.mubr.f32.mxu0 0.0
        %1855 = vmatmul.mubr.f32.gmra.mrb[0].mxu0 %v1773
        %v1856 = vpop.f32.mrb[0].mxu0
        %v1857 = vadd.f32 0.0, %v1856
        %v1858 = vpop.f32.mrb[0].mxu0
        %v1859 = vadd.f32 0.0, %v1858
        %1860 = vmatprep.mubr.f32.mxu0 0.0
        %1861 = vmatmul.mubr.f32.gmra.mrb[0].mxu0 %v1776
        %v1862 = vpop.f32.mrb[0].mxu0
        %v1863 = vadd.f32 0.0, %v1862
        %v1864 = vpop.f32.mrb[0].mxu0
        %v1865 = vadd.f32 0.0, %v1864
        %1866 = vdwg.mxu0
        %v1867 = vmax.f32 %v584, %v596
        %v1868 = vmax.f32 %v590, %v602
        %v1869 = vmax.f32 %v1867, %v1868
        %v1870 = vrot.slane %v1869, 4
        %v1871 = vmax.f32 %v1869, %v1870
        %v1872 = vrot.slane %v1871, 2
        %v1873 = vmax.f32 %v1871, %v1872
        %v1874 = vrot.slane %v1873, 1
        %v1875 = vmax.f32 %v1873, %v1874
        %v1876 = vmax.f32 %v586, %v598
        %v1877 = vmax.f32 %v592, %v604
        %v1878 = vmax.f32 %v1876, %v1877
        %v1879 = vrot.slane %v1878, 4
        %v1880 = vmax.f32 %v1878, %v1879
        %v1881 = vrot.slane %v1880, 2
        %v1882 = vmax.f32 %v1880, %v1881
        %v1883 = vrot.slane %v1882, 1
        %v1884 = vmax.f32 %v1882, %v1883
        %v1885 = vsub.f32 %v584, %v1875
        %v1886 = vsub.f32 %v586, %v1884
        %v1887 = vsub.f32 %v590, %v1875
        %v1888 = vsub.f32 %v592, %v1884
        %v1889 = vsub.f32 %v596, %v1875
        %v1890 = vsub.f32 %v598, %v1884
        %v1891 = vsub.f32 %v602, %v1875
        %v1892 = vsub.f32 %v604, %v1884
        %v1893 = vmul.f32 %v1885, 1.442695
        %v1894 = vpow.pop %v1893
        %v1895 = vmul.f32 %v1886, 1.442695
        %v1896 = vpow.pop %v1895
        %v1897 = vmul.f32 %v1887, 1.442695
        %v1898 = vpow.pop %v1897
        %v1899 = vmul.f32 %v1888, 1.442695
        %v1900 = vpow.pop %v1899
        %v1901 = vmul.f32 %v1889, 1.442695
        %v1902 = vpow.pop %v1901
        %v1903 = vmul.f32 %v1890, 1.442695
        %v1904 = vpow.pop %v1903
        %v1905 = vmul.f32 %v1891, 1.442695
        %v1906 = vpow.pop %v1905
        %v1907 = vmul.f32 %v1892, 1.442695
        %v1908 = vpow.pop %v1907
        %v1909 = vadd.f32 %v1894, %v1898
        %v1910 = vadd.f32 %v1909, %v1902
        %v1911 = vadd.f32 %v1910, %v1906
        %v1912 = vrot.slane %v1911, 4
        %v1913 = vadd.f32 %v1911, %v1912
        %v1914 = vrot.slane %v1913, 2
        %v1915 = vadd.f32 %v1913, %v1914
        %v1916 = vrot.slane %v1915, 1
        %v1917 = vadd.f32 %v1915, %v1916
        %v1918 = vadd.f32 %v1896, %v1900
        %v1919 = vadd.f32 %v1918, %v1904
        %v1920 = vadd.f32 %v1919, %v1908
        %v1921 = vrot.slane %v1920, 4
        %v1922 = vadd.f32 %v1920, %v1921
        %v1923 = vrot.slane %v1922, 2
        %v1924 = vadd.f32 %v1922, %v1923
        %v1925 = vrot.slane %v1924, 1
        %v1926 = vadd.f32 %v1924, %v1925
        %v1927 = vrcp.pop %v1917
        %v1928 = vmul.f32 %v1894, %v1927
        %v1929 = vrcp.pop %v1926
        %v1930 = vmul.f32 %v1896, %v1929
        %v1931 = vmul.f32 %v1898, %v1927
        %v1932 = vmul.f32 %v1900, %v1929
        %v1933 = vmul.f32 %v1902, %v1927
        %v1934 = vmul.f32 %v1904, %v1929
        %v1935 = vmul.f32 %v1906, %v1927
        %v1936 = vmul.f32 %v1908, %v1929
        %v1937 = vmul.f32 %v1928, 0.17677669
        %v1938 = vmul.f32 %v1930, 0.17677669
        %v1939 = vmul.f32 %v1931, 0.17677669
        %v1940 = vmul.f32 %v1932, 0.17677669
        %v1941 = vmul.f32 %v1933, 0.17677669
        %v1942 = vmul.f32 %v1934, 0.17677669
        %v1943 = vmul.f32 %v1935, 0.17677669
        %v1944 = vmul.f32 %v1936, 0.17677669
        %v1945 = vmax.f32 %v680, %v682
        %1946 = vmax.xlane.f32.xlu0 %v1945
        %v1947 = vpop.xlane.xlu0 %1946
        %v1948 = vmax.f32 %v686, %v688
        %1949 = vmax.xlane.f32.xlu0 %v1948
        %v1950 = vpop.xlane.xlu0 %1949
        %v1951 = vmax.f32 %v692, %v694
        %1952 = vmax.xlane.f32.xlu0 %v1951
        %v1953 = vpop.xlane.xlu0 %1952
        %v1954 = vmax.f32 %v698, %v700
        %1955 = vmax.xlane.f32.xlu0 %v1954
        %v1956 = vpop.xlane.xlu0 %1955
        %v1957 = vsub.f32 %v680, %v1947
        %v1958 = vsub.f32 %v682, %v1947
        %v1959 = vsub.f32 %v686, %v1950
        %v1960 = vsub.f32 %v688, %v1950
        %v1961 = vsub.f32 %v692, %v1953
        %v1962 = vsub.f32 %v694, %v1953
        %v1963 = vsub.f32 %v698, %v1956
        %v1964 = vsub.f32 %v700, %v1956
        %v1965 = vmul.f32 %v1957, 1.442695
        %v1966 = vpow.pop %v1965
        %v1967 = vmul.f32 %v1958, 1.442695
        %v1968 = vpow.pop %v1967
        %v1969 = vmul.f32 %v1959, 1.442695
        %v1970 = vpow.pop %v1969
        %v1971 = vmul.f32 %v1960, 1.442695
        %v1972 = vpow.pop %v1971
        %v1973 = vmul.f32 %v1961, 1.442695
        %v1974 = vpow.pop %v1973
        %v1975 = vmul.f32 %v1962, 1.442695
        %v1976 = vpow.pop %v1975
        %v1977 = vmul.f32 %v1963, 1.442695
        %v1978 = vpow.pop %v1977
        %v1979 = vmul.f32 %v1964, 1.442695
        %v1980 = vpow.pop %v1979
        %v1981 = vadd.f32 %v1966, %v1968
        %1982 = vadd.xlane.f32.xlu0 %v1981
        %v1983 = vpop.xlane.xlu0 %1982
        %v1984 = vadd.f32 %v1970, %v1972
        %1985 = vadd.xlane.f32.xlu0 %v1984
        %v1986 = vpop.xlane.xlu0 %1985
        %v1987 = vadd.f32 %v1974, %v1976
        %1988 = vadd.xlane.f32.xlu0 %v1987
        %v1989 = vpop.xlane.xlu0 %1988
        %v1990 = vadd.f32 %v1978, %v1980
        %1991 = vadd.xlane.f32.xlu0 %v1990
        %v1992 = vpop.xlane.xlu0 %1991
        %v1993 = vrcp.pop %v1983
        %v1994 = vmul.f32 %v1966, %v1993
        %v1995 = vmul.f32 %v1968, %v1993
        %v1996 = vrcp.pop %v1986
        %v1997 = vmul.f32 %v1970, %v1996
        %v1998 = vmul.f32 %v1972, %v1996
        %v1999 = vrcp.pop %v1989
        %v2000 = vmul.f32 %v1974, %v1999
        %v2001 = vmul.f32 %v1976, %v1999
        %v2002 = vrcp.pop %v1992
        %v2003 = vmul.f32 %v1978, %v2002
        %v2004 = vmul.f32 %v1980, %v2002
        %2005 = vmatprep.subr.mxu0 %v778
        %2006 = vmatpush1.xpose.msra.mxu0 %v776
        %2007 = vmatprep.subr.mxu0 %v784
        %2008 = vmatpush1.xpose.msra.mxu0 %v782
        %2009 = vmatprep.subr.mxu0 %v790
        %2010 = vmatpush1.xpose.msra.mxu0 %v788
        %2011 = vmatprep.subr.mxu0 %v796
        %2012 = vmatpush1.xpose.msra.mxu0 %v794
        %2013 = vmatprep.subr.mxu0 0.0
        %2014 = vmatpush1.xpose.msra.mxu0 0.0
        %2015 = vmatprep.subr.mxu0 0.0
        %2016 = vmatpush1.xpose.msra.mxu0 0.0
        %2017 = vmatprep.subr.mxu0 0.0
        %2018 = vmatpush1.xpose.msra.mxu0 0.0
        %2019 = vmatprep.subr.mxu0 0.0
        %2020 = vmatpush1.xpose.msra.mxu0 0.0
        %2021 = vmatprep.subr.mxu0 0.0
        %2022 = vmatpush1.xpose.msra.mxu0 0.0
        %2023 = vmatprep.subr.mxu0 0.0
        %2024 = vmatpush1.xpose.msra.mxu0 0.0
        %2025 = vmatprep.subr.mxu0 0.0
        %2026 = vmatpush1.xpose.msra.mxu0 0.0
        %2027 = vmatprep.subr.mxu0 0.0
        %2028 = vmatpush1.xpose.msra.mxu0 0.0
        %2029 = vmatprep.subr.mxu0 0.0
        %2030 = vmatpush1.xpose.msra.mxu0 0.0
        %2031 = vmatprep.subr.mxu0 0.0
        %2032 = vmatpush1.xpose.msra.mxu0 0.0
        %2033 = vmatprep.subr.mxu0 0.0
        %2034 = vmatpush1.xpose.msra.mxu0 0.0
        %2035 = vmatprep.subr.mxu0 0.0
        %2036 = vmatpush1.xpose.msra.mxu0 0.0
        %2037 = vmatprep.subr.mxu0 0.0
        %2038 = vmatpush1.xpose.msra.mxu0 0.0
        %2039 = vmatprep.subr.mxu0 0.0
        %2040 = vmatpush1.xpose.msra.mxu0 0.0
        %2041 = vmatprep.subr.mxu0 0.0
        %2042 = vmatpush1.xpose.msra.mxu0 0.0
        %2043 = vmatprep.subr.mxu0 0.0
        %2044 = vmatpush1.xpose.msra.mxu0 0.0
        %2045 = vmatprep.subr.mxu0 0.0
        %2046 = vmatpush1.xpose.msra.mxu0 0.0
        %2047 = vmatprep.subr.mxu0 0.0
        %2048 = vmatpush1.xpose.msra.mxu0 0.0
        %2049 = vmatprep.subr.mxu0 0.0
        %2050 = vmatpush1.xpose.msra.mxu0 0.0
        %2051 = vmatprep.subr.mxu0 0.0
        %2052 = vmatpush1.xpose.msra.mxu0 0.0
        %2053 = vmatprep.subr.mxu0 0.0
        %2054 = vmatpush1.xpose.msra.mxu0 0.0
        %2055 = vmatprep.subr.mxu0 0.0
        %2056 = vmatpush1.xpose.msra.mxu0 0.0
        %2057 = vmatprep.subr.mxu0 0.0
        %2058 = vmatpush1.xpose.msra.mxu0 0.0
        %2059 = vmatprep.subr.mxu0 0.0
        %2060 = vmatpush1.xpose.msra.mxu0 0.0
        %2061 = vmatprep.subr.mxu0 0.0
        %2062 = vmatpush1.xpose.msra.mxu0 0.0
        %2063 = vmatprep.subr.mxu0 0.0
        %2064 = vmatpush1.xpose.msra.mxu0 0.0
        %2065 = vmatprep.subr.mxu0 0.0
        %2066 = vmatpush1.xpose.msra.mxu0 0.0
        %2067 = vmatprep.subr.mxu0 0.0
        %2068 = vmatpush1.xpose.msra.mxu0 0.0
        %2069 = vmatprep.mubr.f32.mxu0 %v1995
        %2070 = vmatmul.mubr.f32.gmra.mrb[0].mxu0 %v1994
        %v2071 = vpop.f32.mrb[0].mxu0
        %v2072 = vadd.f32 0.0, %v2071
        %v2073 = vpop.f32.mrb[0].mxu0
        %2074 = vmatprep.mubr.f32.mxu0 %v1998
        %2075 = vmatmul.mubr.f32.gmra.mrb[0].mxu0 %v1997
        %v2076 = vpop.f32.mrb[0].mxu0
        %v2077 = vadd.f32 0.0, %v2076
        %v2078 = vpop.f32.mrb[0].mxu0
        %2079 = vmatprep.mubr.f32.mxu0 %v2001
        %2080 = vmatmul.mubr.f32.gmra.mrb[0].mxu0 %v2000
        %v2081 = vpop.f32.mrb[0].mxu0
        %v2082 = vadd.f32 0.0, %v2081
        %v2083 = vpop.f32.mrb[0].mxu0
        %2084 = vmatprep.mubr.f32.mxu0 %v2004
        %2085 = vmatmul.mubr.f32.gmra.mrb[0].mxu0 %v2003
        %v2086 = vpop.f32.mrb[0].mxu0
        %v2087 = vadd.f32 0.0, %v2086
        %v2088 = vpop.f32.mrb[0].mxu0
        %2089 = vdwg.mxu0
        %2090 = vxpose.xlu0.b32.start [1/16] %v2072, 128
        %2091 = vxpose.xlu0.b32.cont [2/16] %v2077, 128
        %2092 = vxpose.xlu0.b32.cont [3/16] %v2082, 128
        %2093 = vxpose.xlu0.b32.cont [4/16] %v2087, 128
        %2094 = vxpose.xlu0.b32.cont [5/16] 0.0, 128
        %2095 = vxpose.xlu0.b32.cont [6/16] 0.0, 128
        %2096 = vxpose.xlu0.b32.cont [7/16] 0.0, 128
        %2097 = vxpose.xlu0.b32.cont [8/16] 0.0, 128
        %2098 = vxpose.xlu0.b32.cont [9/16] 0.0, 128
        %2099 = vxpose.xlu0.b32.cont [10/16] 0.0, 128
        %2100 = vxpose.xlu0.b32.cont [11/16] 0.0, 128
        %2101 = vxpose.xlu0.b32.cont [12/16] 0.0, 128
        %2102 = vxpose.xlu0.b32.cont [13/16] 0.0, 128
        %2103 = vxpose.xlu0.b32.cont [14/16] 0.0, 128
        %2104 = vxpose.xlu0.b32.cont [15/16] 0.0, 128
        %2105 = vxpose.xlu0.b32.end [16/16] 0.0, 128
        %v2106 = vpop.trf.xlu0
        %v2107 = vpop.trf.xlu0
        %v2108 = vpop.trf.xlu0
        %v2109 = vpop.trf.xlu0
        %v2110 = vpop.trf.xlu0
        %v2111 = vpop.trf.xlu0
        %v2112 = vpop.trf.xlu0
        %v2113 = vpop.trf.xlu0
        %v2114 = vpop.trf.xlu0
        %v2115 = vpop.trf.xlu0
        %v2116 = vpop.trf.xlu0
        %v2117 = vpop.trf.xlu0
        %v2118 = vpop.trf.xlu0
        %v2119 = vpop.trf.xlu0
        %v2120 = vpop.trf.xlu0
        %v2121 = vpop.trf.xlu0
        %v2123 = vsel %vm1053, %v2106, 0
        %v2126 = vsel %vm1053, %v2107, 0
        %v2129 = vsel %vm1053, %v2108, 0
        %v2132 = vsel %vm1053, %v2109, 0
        %2134 = vmatprep.subr.mxu0 %v1938
        %2135 = vmatpush1.msra.mxu0 %v1937
        %2136 = vmatprep.subr.mxu0 %v1940
        %2137 = vmatpush1.msra.mxu0 %v1939
        %2138 = vmatprep.subr.mxu0 %v1942
        %2139 = vmatpush1.msra.mxu0 %v1941
        %2140 = vmatprep.subr.mxu0 %v1944
        %2141 = vmatpush1.msra.mxu0 %v1943
        %2142 = vmatprep.subr.mxu0 0.0
        %2143 = vmatpush1.msra.mxu0 0.0
        %2144 = vmatprep.subr.mxu0 0.0
        %2145 = vmatpush1.msra.mxu0 0.0
        %2146 = vmatprep.subr.mxu0 0.0
        %2147 = vmatpush1.msra.mxu0 0.0
        %2148 = vmatprep.subr.mxu0 0.0
        %2149 = vmatpush1.msra.mxu0 0.0
        %2150 = vmatprep.subr.mxu0 0.0
        %2151 = vmatpush1.msra.mxu0 0.0
        %2152 = vmatprep.subr.mxu0 0.0
        %2153 = vmatpush1.msra.mxu0 0.0
        %2154 = vmatprep.subr.mxu0 0.0
        %2155 = vmatpush1.msra.mxu0 0.0
        %2156 = vmatprep.subr.mxu0 0.0
        %2157 = vmatpush1.msra.mxu0 0.0
        %2158 = vmatprep.subr.mxu0 0.0
        %2159 = vmatpush1.msra.mxu0 0.0
        %2160 = vmatprep.subr.mxu0 0.0
        %2161 = vmatpush1.msra.mxu0 0.0
        %2162 = vmatprep.subr.mxu0 0.0
        %2163 = vmatpush1.msra.mxu0 0.0
        %2164 = vmatprep.subr.mxu0 0.0
        %2165 = vmatpush1.msra.mxu0 0.0
        %2166 = vmatprep.subr.mxu0 0.0
        %2167 = vmatpush1.msra.mxu0 0.0
        %2168 = vmatprep.subr.mxu0 0.0
        %2169 = vmatpush1.msra.mxu0 0.0
        %2170 = vmatprep.subr.mxu0 0.0
        %2171 = vmatpush1.msra.mxu0 0.0
        %2172 = vmatprep.subr.mxu0 0.0
        %2173 = vmatpush1.msra.mxu0 0.0
        %2174 = vmatprep.subr.mxu0 0.0
        %2175 = vmatpush1.msra.mxu0 0.0
        %2176 = vmatprep.subr.mxu0 0.0
        %2177 = vmatpush1.msra.mxu0 0.0
        %2178 = vmatprep.subr.mxu0 0.0
        %2179 = vmatpush1.msra.mxu0 0.0
        %2180 = vmatprep.subr.mxu0 0.0
        %2181 = vmatpush1.msra.mxu0 0.0
        %2182 = vmatprep.subr.mxu0 0.0
        %2183 = vmatpush1.msra.mxu0 0.0
        %2184 = vmatprep.subr.mxu0 0.0
        %2185 = vmatpush1.msra.mxu0 0.0
        %2186 = vmatprep.subr.mxu0 0.0
        %2187 = vmatpush1.msra.mxu0 0.0
        %2188 = vmatprep.subr.mxu0 0.0
        %2189 = vmatpush1.msra.mxu0 0.0
        %2190 = vmatprep.subr.mxu0 0.0
        %2191 = vmatpush1.msra.mxu0 0.0
        %2192 = vmatprep.subr.mxu0 0.0
        %2193 = vmatpush1.msra.mxu0 0.0
        %2194 = vmatprep.subr.mxu0 0.0
        %2195 = vmatpush1.msra.mxu0 0.0
        %2196 = vmatprep.subr.mxu0 0.0
        %2197 = vmatpush1.msra.mxu0 0.0
        %2198 = vmatprep.mubr.f32.mxu0 0.0
        %2199 = vmatmul.mubr.f32.gmra.mrb[0].mxu0 %v2123
        %v2200 = vpop.f32.mrb[0].mxu0
        %v2201 = vadd.f32 0.0, %v2200
        %v2202 = vpop.f32.mrb[0].mxu0
        %v2203 = vadd.f32 0.0, %v2202
        %2204 = vmatprep.mubr.f32.mxu0 0.0
        %2205 = vmatmul.mubr.f32.gmra.mrb[0].mxu0 %v2126
        %v2206 = vpop.f32.mrb[0].mxu0
        %v2207 = vadd.f32 0.0, %v2206
        %v2208 = vpop.f32.mrb[0].mxu0
        %v2209 = vadd.f32 0.0, %v2208
        %2210 = vmatprep.mubr.f32.mxu0 0.0
        %2211 = vmatmul.mubr.f32.gmra.mrb[0].mxu0 %v2129
        %v2212 = vpop.f32.mrb[0].mxu0
        %v2213 = vadd.f32 0.0, %v2212
        %v2214 = vpop.f32.mrb[0].mxu0
        %v2215 = vadd.f32 0.0, %v2214
        %2216 = vmatprep.mubr.f32.mxu0 0.0
        %2217 = vmatmul.mubr.f32.gmra.mrb[0].mxu0 %v2132
        %v2218 = vpop.f32.mrb[0].mxu0
        %v2219 = vadd.f32 0.0, %v2218
        %v2220 = vpop.f32.mrb[0].mxu0
        %v2221 = vadd.f32 0.0, %v2220
        %2222 = vdwg.mxu0
        %v2223 = vld [vmem:[%s2] sm:$0xf]
        %v2224 = vld [vmem:[%s3] sm:$0xf]
        %2226 = vset.pattern.permute.xlu0 0
        %2227 = vperm.xlu0 %2226, %v2224
        %v2228 = vpop.permute.xlu0 %2227
        %2230 = vmatprep.subr.mxu0 %v1135
        %2231 = vmatpush1.msra.mxu0 %v1133
        %2232 = vmatprep.subr.mxu0 %v1141
        %2233 = vmatpush1.msra.mxu0 %v1139
        %2234 = vmatprep.subr.mxu0 %v1147
        %2235 = vmatpush1.msra.mxu0 %v1145
        %2236 = vmatprep.subr.mxu0 %v1153
        %2237 = vmatpush1.msra.mxu0 %v1151
        %2238 = vmatprep.subr.mxu0 %v1491
        %2239 = vmatpush1.msra.mxu0 %v1489
        %2240 = vmatprep.subr.mxu0 %v1497
        %2241 = vmatpush1.msra.mxu0 %v1495
        %2242 = vmatprep.subr.mxu0 %v1503
        %2243 = vmatpush1.msra.mxu0 %v1501
        %2244 = vmatprep.subr.mxu0 %v1509
        %2245 = vmatpush1.msra.mxu0 %v1507
        %2246 = vmatprep.subr.mxu0 %v1847
        %2247 = vmatpush1.msra.mxu0 %v1845
        %2248 = vmatprep.subr.mxu0 %v1853
        %2249 = vmatpush1.msra.mxu0 %v1851
        %2250 = vmatprep.subr.mxu0 %v1859
        %2251 = vmatpush1.msra.mxu0 %v1857
        %2252 = vmatprep.subr.mxu0 %v1865
        %2253 = vmatpush1.msra.mxu0 %v1863
        %2254 = vmatprep.subr.mxu0 %v2203
        %2255 = vmatpush1.msra.mxu0 %v2201
        %2256 = vmatprep.subr.mxu0 %v2209
        %2257 = vmatpush1.msra.mxu0 %v2207
        %2258 = vmatprep.subr.mxu0 %v2215
        %2259 = vmatpush1.msra.mxu0 %v2213
        %2260 = vmatprep.subr.mxu0 %v2221
        %2261 = vmatpush1.msra.mxu0 %v2219
        %2262 = vmatprep.subr.mxu0 0.0
        %2263 = vmatpush1.msra.mxu0 0.0
        %2264 = vmatprep.subr.mxu0 0.0
        %2265 = vmatpush1.msra.mxu0 0.0
        %2266 = vmatprep.subr.mxu0 0.0
        %2267 = vmatpush1.msra.mxu0 0.0
        %2268 = vmatprep.subr.mxu0 0.0
        %2269 = vmatpush1.msra.mxu0 0.0
        %2270 = vmatprep.subr.mxu0 0.0
        %2271 = vmatpush1.msra.mxu0 0.0
        %2272 = vmatprep.subr.mxu0 0.0
        %2273 = vmatpush1.msra.mxu0 0.0
        %2274 = vmatprep.subr.mxu0 0.0
        %2275 = vmatpush1.msra.mxu0 0.0
        %2276 = vmatprep.subr.mxu0 0.0
        %2277 = vmatpush1.msra.mxu0 0.0
        %2278 = vmatprep.subr.mxu0 0.0
        %2279 = vmatpush1.msra.mxu0 0.0
        %2280 = vmatprep.subr.mxu0 0.0
        %2281 = vmatpush1.msra.mxu0 0.0
        %2282 = vmatprep.subr.mxu0 0.0
        %2283 = vmatpush1.msra.mxu0 0.0
        %2284 = vmatprep.subr.mxu0 0.0
        %2285 = vmatpush1.msra.mxu0 0.0
        %2286 = vmatprep.subr.mxu0 0.0
        %2287 = vmatpush1.msra.mxu0 0.0
        %2288 = vmatprep.subr.mxu0 0.0
        %2289 = vmatpush1.msra.mxu0 0.0
        %2290 = vmatprep.subr.mxu0 0.0
        %2291 = vmatpush1.msra.mxu0 0.0
        %2292 = vmatprep.subr.mxu0 0.0
        %2293 = vmatpush1.msra.mxu0 0.0
        %2294 = vmatprep.mubr.f32.mxu0 0.0
        %2295 = vmatmul.mubr.f32.gmra.mrb[0].mxu0 %v2223
        %v2296 = vpop.f32.mrb[0].mxu0
        %v2297 = vadd.f32 %v2228, %v2296
        %v2298 = vpop.f32.mrb[0].mxu0
        %v2299 = vadd.f32 %v2228, %v2298
        %2300 = vdwg.mxu0
        %vm2301 = vcmask 1043456
        %v2302 = vsel %vm2301, %v2297, 0.0
        %v2303 = vsel %vm2301, %v2299, 0.0
        %v2304 = vadd.f32 %v2302, %v2303
        %2305 = vadd.xlane.f32.xlu0 %v2304
        %v2306 = vpop.xlane.xlu0 %2305
        %v2307 = vrcp.pop 256.0
        %v2308 = vmul.f32 %v2306, %v2307
        %v2309 = vsel %vm2301, %v2308, 0.0
        %v2310 = vrot.slane %v2309, 4
        %v2311 = vadd.f32 %v2309, %v2310
        %v2312 = vrot.slane %v2311, 2
        %v2313 = vadd.f32 %v2311, %v2312
        %v2314 = vrot.slane %v2313, 1
        %v2315 = vadd.f32 %v2313, %v2314
        %v2316 = vrcp.pop 4.0
        %v2317 = vmul.f32 %v2315, %v2316
        %v2318 = vsub.f32 %v2297, %v2317
        %v2319 = vsub.f32 %v2299, %v2317
        %v2320 = vmul.f32 %v2318, %v2318
        %v2321 = vmul.f32 %v2319, %v2319
        %v2322 = vsel %vm2301, %v2320, 0.0
        %v2323 = vsel %vm2301, %v2321, 0.0
        %v2324 = vadd.f32 %v2322, %v2323
        %2325 = vadd.xlane.f32.xlu0 %v2324
        %v2326 = vpop.xlane.xlu0 %2325
        %v2327 = vmul.f32 %v2326, %v2307
        %v2328 = vsel %vm2301, %v2327, 0.0
        %v2329 = vrot.slane %v2328, 4
        %v2330 = vadd.f32 %v2328, %v2329
        %v2331 = vrot.slane %v2330, 2
        %v2332 = vadd.f32 %v2330, %v2331
        %v2333 = vrot.slane %v2332, 1
        %v2334 = vadd.f32 %v2332, %v2333
        %v2335 = vmul.f32 %v2334, %v2316
        %v2336 = vadd.f32 %v2335, 1e-05
        %v2337 = vrsqrt.pop %v2336
        %v2338 = vmul.f32 %v2318, %v2337
        %v2339 = vmul.f32 %v2319, %v2337
        %v2340 = vld [vmem:[%s4] sm:$0xf]
        %2342 = vset.pattern.permute.xlu0 0
        %2343 = vperm.xlu0 %2342, %v2340
        %v2344 = vpop.permute.xlu0 %2343
        %v2346 = vmul.f32 %v2338, %v2344
        %v2347 = vmul.f32 %v2339, %v2344
        %v2348 = vld [vmem:[%s5] sm:$0xf]
        %2350 = vset.pattern.permute.xlu0 0
        %2351 = vperm.xlu0 %2350, %v2348
        %v2352 = vpop.permute.xlu0 %2351
        %v2354 = vadd.f32 %v2346, %v2352
        %v2355 = vadd.f32 %v2347, %v2352
        %v2358 = vcombine.low %v2354, %v2355
        %2360 = vst [vmem:[%s244] sm:$0xff] %v2358
        %s2361 = sand.u32 %s159, 1
        %s2362 = scalar_lea.sflag [#allocation3], %s2361
        %s2363 = sand.u32 %s159, 1
        %s2364 = smul.addr %s2363, 8
        %s2365 = scalar_lea.vmem [#allocation2], %s2364
        // Predicated region
        $region45: #{tpu_custom_call.1} parent=43 // pred_check
          %p2366 = pneg %p169
        $region46: #{tpu_custom_call.1} parent=43 // pred_check_branch
          %2368 = sbr.rel (%p2366) target = $region48
        $region47: #{tpu_custom_call.1} parent=43 // pred_region
          %s2370 = ssub.s32 128, 128
          %2371 = vsyncadd %s2362, %s2370
          %s2372 = smul.addr %s20, 2
          %s2373 = smul.addr %s2372, 64
          %s2374 = scalar_lea.hbm %s6, %s2373
          %s2376 = sshll.u32 %s2365, 4
          %s2377 = int_to_ptr.vmem [resolvable:$true] %s2376
          %2379 = dma.vmem_to_hbm [thread:$0]  %s2377, 128, %s2374, %s2362
        $region48: #{tpu_custom_call.1} parent=43 // pred_fallthru
          _
      $region44: #{tpu_custom_call.1} parent=5 // pred_fallthru
        _
      %p2380 = scmp.le.s32.totalorder 2, %s15
      // Predicated region
      $region49: #{tpu_custom_call.1} parent=5 // pred_check
        %p2381 = pneg %p2380
      $region50: #{tpu_custom_call.1} parent=5 // pred_check_branch
        %2383 = sbr.rel (%p2381) target = $region52
      $region51: #{tpu_custom_call.1} parent=5 // pred_region
        %s2384 = ssub.s32 %s15, 2
        // Predicated region
        $region53: #{tpu_custom_call.1} parent=51 // pred_check
          %p2385 = pneg %p175
        $region54: #{tpu_custom_call.1} parent=51 // pred_check_branch
          %2387 = sbr.rel (%p2385) target = $region56
        $region55: #{tpu_custom_call.1} parent=51 // pred_region
          %s2388 = sand.u32 %s160, 1
          %s2389 = scalar_lea.sflag [#allocation3], %s2388
          %s2390 = sand.u32 %s160, 1
          %s2391 = smul.addr %s2390, 8
          %s2392 = scalar_lea.vmem [#allocation2], %s2391
          %2393 = dma.done %s2389, 128
        $region56: #{tpu_custom_call.1} parent=51 // pred_fallthru
          _
      $region52: #{tpu_custom_call.1} parent=5 // pred_fallthru
        _
    $region6: #{tpu_custom_call.1} parent=1 // loop_footer
      %s19 = sadd.s32 1, %s15
    $region7: #{tpu_custom_call.1} parent=1 // loop_footer_branch
      %14 = sbr.rel target = $region3
    $region8: #{tpu_custom_call.1} parent=1 // loop_exit
      _
    %2394 = vsyncpa [#allocation3], 1
    %s2395 = scalar_lea.sflag [#allocation3], 1
    %2396 = vsyncpa %s2395, 1

</llo_original>
